<compile_context>
chip_gen: v7x
topology: tpu7x:2x2x1
jax: 0.10.0
libtpu: 0.0.40
codegen_flags: <defaults>
</compile_context>

<pallas_src>
import functools

import jax
import jax.numpy as jnp
import numpy as np
from jax.experimental import pallas as pl
from jax.experimental.pallas import tpu as pltpu

LEAKY_SLOPE = 0.01  # F.leaky_relu default negative_slope


def _leaky(x):
    return jnp.where(x > 0, x, LEAKY_SLOPE * x)


# --------------------------------------------------------------------------
# Pallas kernel: one grid step == TN ensemble members, member axis on lanes
# --------------------------------------------------------------------------
def primary_kernel(xin_ref, scale_ref, shift_ref, mask_ref,
                   wf_ref, bf_ref, wh_ref, bh_ref, whd_ref, bhd_ref,
                   out_ref, *, hidden_layers, compute_dtype):
    # shared-input fused first layer: (B, IN) @ (IN, TN*H) -> (B, TN*H)
    x = xin_ref[...].astype(compute_dtype)
    y = jnp.dot(x, wf_ref[0], preferred_element_type=jnp.float32) + bf_ref[0]
    y = _leaky(y)                                              # (B, TN*H) f32

    # block-diagonal hidden layers: one MXU push per layer for all TN members
    for j in range(hidden_layers):
        y = _leaky(jnp.dot(y.astype(compute_dtype), wh_ref[j, 0],
                           preferred_element_type=jnp.float32) + bh_ref[j, 0])

    # block-diagonal fused heads: [state | reward | done] x TN members
    h = jnp.dot(y.astype(compute_dtype), whd_ref[0],
                preferred_element_type=jnp.float32) + bhd_ref[0]   # (B, HEADW)

    # residual-add + de-normalization folded into a per-lane affine
    h = h * scale_ref[...] + shift_ref[...]
    # sigmoid only on the done lanes (precomputed mask; EUP slot)
    h = jnp.where(mask_ref[...] > 0, jax.nn.sigmoid(h), h)

    out_ref[...] = h                                           # one lane-dense store


# --------------------------------------------------------------------------
# host glue: slice the flat hyper-weight row exactly as the PyTorch module,
# then re-lay it out into lane-fused / block-diagonal slabs.
# --------------------------------------------------------------------------
def _split_raw(w, obs_units, act_units, hidden_units, hidden_layers):
    N = w.shape[0]
    H = hidden_units
    Hh = H // 2
    idx = 0

    def take(n):
        nonlocal idx
        out = w[:, idx:idx + n]
        idx += n
        return out

    w_obs = take(obs_units * Hh).reshape(N, Hh, obs_units)
    b_obs = take(Hh)
    w_act = take(act_units * Hh).reshape(N, Hh, act_units)
    b_act = take(Hh)
    whs, bhs = [], []
    for _ in range(hidden_layers):
        whs.append(take(H * H).reshape(N, H, H))
        bhs.append(take(H))
    w_state = take(H * obs_units).reshape(N, obs_units, H)
    b_state = take(obs_units)
    w_reward = take(H).reshape(N, 1, H)
    b_reward = take(1)
    w_done = take(H).reshape(N, 1, H)
    b_done = take(1)
    return dict(w_obs=w_obs, b_obs=b_obs, w_act=w_act, b_act=b_act,
                w_h=whs, b_h=bhs, w_state=w_state, b_state=b_state,
                w_reward=w_reward, b_reward=b_reward,
                w_done=w_done, b_done=b_done)


def _prepare_slabs(w, obs_units, act_units, hidden_units, hidden_layers,
                   member_tile, head_width, weight_dtype):
    p = _split_raw(w, obs_units, act_units, hidden_units, hidden_layers)
    N = w.shape[0]
    H = hidden_units
    Hh = H // 2
    L = hidden_layers
    IN = obs_units + act_units
    OUTC = obs_units + 2
    TN = member_tile
    n_pad = ((N + TN - 1) // TN) * TN
    n_blocks = n_pad // TN
    TNH = TN * H

    def pad_members(x):
        if n_pad == N:
            return x
        return jnp.pad(x, ((0, n_pad - N),) + ((0, 0),) * (x.ndim - 1))

    eye = jnp.eye(TN, dtype=jnp.float32)

    # ---- first layer: shared input, members fused along output lanes -------
    wf = jnp.zeros((n_pad, IN, H), jnp.float32)
    wf = wf.at[:N, :obs_units, :Hh].set(jnp.transpose(p["w_obs"], (0, 2, 1)))
    wf = wf.at[:N, obs_units:, Hh:].set(jnp.transpose(p["w_act"], (0, 2, 1)))
    w_first = (wf.reshape(n_blocks, TN, IN, H)
                 .transpose(0, 2, 1, 3)
                 .reshape(n_blocks, IN, TNH))
    b_first = pad_members(
        jnp.concatenate([p["b_obs"], p["b_act"]], axis=-1)).reshape(n_blocks, 1, TNH)

    # ---- hidden layers: block-diagonal (TN*H, TN*H) per layer per block ----
    w_hid_list, b_hid_list = [], []
    for l in range(L):
        whl = pad_members(jnp.transpose(p["w_h"][l], (0, 2, 1)))     # (n_pad,H,H) (in,out)
        whl = whl.reshape(n_blocks, TN, H, H)
        bd = jnp.einsum('bmij,mn->bminj', whl, eye)                  # block-diag scatter
        w_hid_list.append(bd.reshape(n_blocks, TNH, TNH))
        b_hid_list.append(pad_members(p["b_h"][l]).reshape(n_blocks, 1, TNH))
    w_hid = jnp.stack(w_hid_list, axis=0)                            # (L,nb,TNH,TNH)
    b_hid = jnp.stack(b_hid_list, axis=0)                            # (L,nb,1,TNH)

    # ---- heads: block-diagonal (TN*H, HEADW), lane-padded to mult of 128 ---
    wh_m = jnp.concatenate([jnp.transpose(p["w_state"], (0, 2, 1)),
                            jnp.transpose(p["w_reward"], (0, 2, 1)),
                            jnp.transpose(p["w_done"], (0, 2, 1))], axis=-1)  # (N,H,OUTC)
    wh_m = pad_members(wh_m).reshape(n_blocks, TN, H, OUTC)
    w_head = jnp.einsum('bmho,mn->bmhno', wh_m, eye).reshape(n_blocks, TNH, TN * OUTC)
    w_head = jnp.pad(w_head, ((0, 0), (0, 0), (0, head_width - TN * OUTC)))
    b_head = pad_members(jnp.concatenate(
        [p["b_state"], p["b_reward"], p["b_done"]], axis=-1)).reshape(n_blocks, TN * OUTC)
    b_head = jnp.pad(b_head, ((0, 0), (0, head_width - TN * OUTC))).reshape(
        n_blocks, 1, head_width)

    # weights streamed in weight_dtype; biases kept f32 (added to f32 acc)
    return (w_first.astype(weight_dtype), b_first,
            w_hid.astype(weight_dtype), b_hid,
            w_head.astype(weight_dtype), b_head)


def primary_forward(obs, action, w, obs_min, obs_max, *,
                    obs_units, act_units, hidden_units, hidden_layers, obs_scale,
                    member_tile=8, weight_dtype=jnp.float32):
    assert hidden_layers >= 1
    assert member_tile >= 1
    N = w.shape[0]
    B = obs.shape[0]
    H = hidden_units
    L = hidden_layers
    IN = obs_units + act_units
    OUTC = obs_units + 2
    TN = member_tile
    n_pad = ((N + TN - 1) // TN) * TN
    n_blocks = n_pad // TN
    TNH = TN * H
    HEADW = ((TN * OUTC + 127) // 128) * 128          # lane-dense fused head width

    obs = obs.astype(jnp.float32)
    action = action.astype(jnp.float32)
    omin = obs_min.astype(jnp.float32)
    omax = obs_max.astype(jnp.float32)

    # forward() preamble: observation normalization (tiny, done once here)
    obs_n = (obs - omin[None]) / (omax[None] - omin[None])
    obs_n = (2.0 * obs_n - 1.0) * obs_scale
    x_in = jnp.concatenate([obs_n, action], axis=-1)                 # (B, IN)

    # fold "+ obs_n" residual and de-normalization into a per-lane affine:
    #   ns_final = ns_raw*sc + (obs_n*sc + sh),  sc=(omax-omin)/(2*s),
    #   sh=0.5*(omax-omin)+omin ; reward/done lanes: identity (then sigmoid on done)
    sc = (omax - omin) / (2.0 * obs_scale)                           # (OBS,)
    sh = 0.5 * (omax - omin) + omin                                  # (OBS,)
    scale_m = jnp.concatenate([sc, jnp.ones((2,), jnp.float32)])     # (OUTC,)
    scale_row = jnp.pad(jnp.tile(scale_m, (TN,)), (0, HEADW - TN * OUTC),
                        constant_values=1.0).reshape(1, HEADW)
    shift_m = jnp.concatenate([obs_n * sc[None] + sh[None],
                               jnp.zeros((B, 2), jnp.float32)], axis=-1)      # (B,OUTC)
    shift_row = jnp.pad(jnp.tile(shift_m, (1, TN)),
                        ((0, 0), (0, HEADW - TN * OUTC)))                     # (B,HEADW)
    mask_m = jnp.zeros((OUTC,), jnp.float32).at[obs_units + 1].set(1.0)
    mask_row = jnp.pad(jnp.tile(mask_m, (TN,)),
                       (0, HEADW - TN * OUTC)).reshape(1, HEADW)

    w_first, b_first, w_hid, b_hid, w_head, b_head = _prepare_slabs(
        w.astype(jnp.float32), obs_units, act_units, H, L, TN, HEADW, weight_dtype)

    kernel = functools.partial(primary_kernel, hidden_layers=L,
                               compute_dtype=weight_dtype)

    in_specs = [
        pl.BlockSpec((B, IN), lambda i: (0, 0)),                # x_in       (grid-invariant)
        pl.BlockSpec((1, HEADW), lambda i: (0, 0)),             # scale_row  (grid-invariant)
        pl.BlockSpec((B, HEADW), lambda i: (0, 0)),             # shift_row  (grid-invariant)
        pl.BlockSpec((1, HEADW), lambda i: (0, 0)),             # mask_row   (grid-invariant)
        pl.BlockSpec((1, IN, TNH), lambda i: (i, 0, 0)),        # w_first
        pl.BlockSpec((1, 1, TNH), lambda i: (i, 0, 0)),         # b_first
        pl.BlockSpec((L, 1, TNH, TNH), lambda i: (0, i, 0, 0)),  # w_hid
        pl.BlockSpec((L, 1, 1, TNH), lambda i: (0, i, 0, 0)),    # b_hid
        pl.BlockSpec((1, TNH, HEADW), lambda i: (i, 0, 0)),     # w_head
        pl.BlockSpec((1, 1, HEADW), lambda i: (i, 0, 0)),       # b_head
    ]
    out_specs = pl.BlockSpec((B, HEADW), lambda i: (0, i))

    # explicit VMEM budget: double-buffered per-block slabs + invariants + margin,
    # capped safely below v7x's 64 MiB physical VMEM.
    wbytes = jnp.dtype(weight_dtype).itemsize
    per_block = ((IN * TNH + L * TNH * TNH + TNH * HEADW) * wbytes
                 + (TNH + L * TNH + HEADW) * 4)
    invariant = (B * IN + (2 + B) * HEADW) * 4
    out_block = B * HEADW * 4
    vmem_limit = int(min(max(2 * (per_block + invariant + out_block) + (4 << 20),
                             32 << 20), 56 << 20))

    out = pl.pallas_call(
        kernel,
        out_shape=jax.ShapeDtypeStruct((B, n_blocks * HEADW), jnp.float32),
        grid_spec=pltpu.PrefetchScalarGridSpec(
            num_scalar_prefetch=0,
            grid=(n_blocks,),
            in_specs=in_specs,
            out_specs=out_specs,
        ),
        compiler_params=pltpu.CompilerParams(
            dimension_semantics=("parallel",),
            vmem_limit_bytes=vmem_limit),
    )(x_in, scale_row, shift_row, mask_row,
      w_first, b_first, w_hid, b_hid, w_head, b_head)

    # un-fuse the lane layout with XLA: (B, nb*HEADW) -> (B, N, OUTC)
    out = out.reshape(B, n_blocks, HEADW)[:, :, :TN * OUTC]
    out = out.reshape(B, n_pad, OUTC)[:, :N, :]
    next_states = out[:, :, :obs_units]                      # (B, N, OBS)
    rewards = out[:, :, obs_units:obs_units + 1]             # (B, N, 1)
    dones = out[:, :, obs_units + 1:obs_units + 2]           # (B, N, 1)
    return next_states, rewards, dones


# --------------------------------------------------------------------------
# Pure-JAX reference (mirrors PrimaryNetwork.forward exactly)
# --------------------------------------------------------------------------
def reference_forward(obs, action, w, obs_min, obs_max, *,
                      obs_units, act_units, hidden_units, hidden_layers, obs_scale):
    p = _split_raw(w, obs_units, act_units, hidden_units, hidden_layers)
    obs_n = (obs - obs_min[None]) / (obs_max[None] - obs_min[None])
    obs_n = (2.0 * obs_n - 1.0) * obs_scale

    o = jnp.einsum('bo,nho->bnh', obs_n, p["w_obs"]) + p["b_obs"][None]
    a = jnp.einsum('ba,nha->bnh', action, p["w_act"]) + p["b_act"][None]
    y = _leaky(jnp.concatenate([o, a], axis=-1))
    for j in range(hidden_layers):
        y = _leaky(jnp.einsum('bnh,ngh->bng', y, p["w_h"][j]) + p["b_h"][j][None])
    ns = (jnp.einsum('bnh,noh->bno', y, p["w_state"]) + p["b_state"][None]
          + obs_n[:, None, :])
    rew = jnp.einsum('bnh,nrh->bnr', y, p["w_reward"]) + p["b_reward"][None]
    dn = jax.nn.sigmoid(jnp.einsum('bnh,nrh->bnr', y, p["w_done"]) + p["b_done"][None])
    ns = (ns / obs_scale + 1.0) * 0.5
    ns = ns * (obs_max[None, None] - obs_min[None, None]) + obs_min[None, None]
    return ns, rew, dn


if __name__ == "__main__":
    B, N = 2, 16                  # batch, ensemble (rows of w)
    OBS, ACT, H, L = 8, 4, 32, 2  # obs_units, act_units, hidden_units, hidden_layers
    OBS_SCALE = 5.0
    Hh = H // 2
    W_TOTAL = (OBS * Hh + Hh) + (ACT * Hh + Hh) + L * (H * H + H) \
              + (H * OBS + OBS) + (H + 1) + (H + 1)

    key = jax.random.PRNGKey(0)
    k1, k2, k3, k4, k5 = jax.random.split(key, 5)
    obs_min = -jnp.abs(jax.random.normal(k1, (OBS,), jnp.float32)) - 1.0
    obs_max = jnp.abs(jax.random.normal(k2, (OBS,), jnp.float32)) + 1.0
    u = jax.random.uniform(k3, (B, OBS), jnp.float32)
    obs = obs_min[None] + u * (obs_max[None] - obs_min[None])
    action = jax.random.normal(k4, (B, ACT), jnp.float32)
    w = 0.1 * jax.random.normal(k5, (N, W_TOTAL), jnp.float32)

    cfg = dict(obs_units=OBS, act_units=ACT, hidden_units=H,
               hidden_layers=L, obs_scale=OBS_SCALE)

    ns_r, rew_r, dn_r = reference_forward(obs, action, w, obs_min, obs_max, **cfg)

    # f32 weight streaming: bit-tight tolerance (matches PyTorch semantics)
    ns, rew, dn = primary_forward(obs, action, w, obs_min, obs_max, **cfg,
                                  member_tile=8, weight_dtype=jnp.float32)
    jax.block_until_ready((ns, rew, dn))
    np.testing.assert_allclose(np.asarray(ns), np.asarray(ns_r), rtol=1e-3, atol=1e-3)
    np.testing.assert_allclose(np.asarray(rew), np.asarray(rew_r), rtol=1e-3, atol=1e-3)
    np.testing.assert_allclose(np.asarray(dn), np.asarray(dn_r), rtol=1e-3, atol=1e-3)
    assert ns.shape == (B, N, OBS) and rew.shape == (B, N, 1) and dn.shape == (B, N, 1)

    # bf16 weight streaming (HBM-bound fast path): looser tolerance
    ns_b, rew_b, dn_b = primary_forward(obs, action, w, obs_min, obs_max, **cfg,
                                        member_tile=8, weight_dtype=jnp.bfloat16)
    jax.block_until_ready((ns_b, rew_b, dn_b))
    np.testing.assert_allclose(np.asarray(ns_b), np.asarray(ns_r), rtol=2e-2, atol=2e-2)
    np.testing.assert_allclose(np.asarray(rew_b), np.asarray(rew_r), rtol=2e-2, atol=2e-2)
    np.testing.assert_allclose(np.asarray(dn_b), np.asarray(dn_r), rtol=2e-2, atol=2e-2)

    print("KERNEL_OK")
</pallas_src>

<mosaic_0001>
module attributes {stable_mosaic.version = 11 : i64} {
  func.func @primary_kernel(%arg0: i32, %arg1: memref<2x12xf32, #tpu.memory_space<vmem>>, %arg2: memref<1x128xf32, #tpu.memory_space<vmem>>, %arg3: memref<2x128xf32, #tpu.memory_space<vmem>>, %arg4: memref<1x128xf32, #tpu.memory_space<vmem>>, %arg5: memref<1x12x256xf32, #tpu.memory_space<vmem>>, %arg6: memref<1x1x256xf32, #tpu.memory_space<vmem>>, %arg7: memref<2x1x256x256xf32, #tpu.memory_space<vmem>>, %arg8: memref<2x1x1x256xf32, #tpu.memory_space<vmem>>, %arg9: memref<1x256x128xf32, #tpu.memory_space<vmem>>, %arg10: memref<1x1x128xf32, #tpu.memory_space<vmem>>, %arg11: memref<2x128xf32, #tpu.memory_space<vmem>>) attributes {dimension_semantics = [#tpu.dimension_semantics<parallel>], iteration_bounds = array<i64: 2>, scalar_prefetch = 0 : i64, scratch_operands = 0 : i64, tpu.core_type = #tpu.core_type<tc>, window_params = [{pipeline_mode = #tpu.pipeline_mode<synchronous>, transform_indices = @transform_0, window_bounds = array<i64: 2, 12>}, {pipeline_mode = #tpu.pipeline_mode<synchronous>, transform_indices = @transform_1, window_bounds = array<i64: 1, 128>}, {pipeline_mode = #tpu.pipeline_mode<synchronous>, transform_indices = @transform_2, window_bounds = array<i64: 2, 128>}, {pipeline_mode = #tpu.pipeline_mode<synchronous>, transform_indices = @transform_3, window_bounds = array<i64: 1, 128>}, {transform_indices = @transform_4, window_bounds = array<i64: 1, 12, 256>}, {transform_indices = @transform_5, window_bounds = array<i64: 1, 1, 256>}, {transform_indices = @transform_6, window_bounds = array<i64: 2, 1, 256, 256>}, {transform_indices = @transform_7, window_bounds = array<i64: 2, 1, 1, 256>}, {transform_indices = @transform_8, window_bounds = array<i64: 1, 256, 128>}, {transform_indices = @transform_9, window_bounds = array<i64: 1, 1, 128>}, {transform_indices = @transform_10, window_bounds = array<i64: 2, 128>}]} {
    %c0 = arith.constant 0 : index
    %c0_0 = arith.constant 0 : index
    %0 = vector.load %arg1[%c0, %c0_0] : memref<2x12xf32, #tpu.memory_space<vmem>>, vector<2x12xf32>
    %c0_1 = arith.constant 0 : index
    %c0_2 = arith.constant 0 : index
    %c0_3 = arith.constant 0 : index
    %1 = vector.load %arg5[%c0_1, %c0_2, %c0_3] : memref<1x12x256xf32, #tpu.memory_space<vmem>>, vector<1x12x256xf32>
    %2 = vector.shape_cast %1 : vector<1x12x256xf32> to vector<12x256xf32>
    %cst = arith.constant dense<0.000000e+00> : vector<2x256xf32>
    %3 = tpu.matmul %0, %2, %cst {dimension_numbers = #tpu.dot_dimension_numbers<[1], [0], [0], [1], [0, 0, 1, 1], [], []>} : vector<2x12xf32>, vector<12x256xf32>, vector<2x256xf32> -> vector<2x256xf32>
    %c0_4 = arith.constant 0 : index
    %c0_5 = arith.constant 0 : index
    %c0_6 = arith.constant 0 : index
    %4 = vector.load %arg6[%c0_4, %c0_5, %c0_6] : memref<1x1x256xf32, #tpu.memory_space<vmem>>, vector<1x1x256xf32>
    %5 = vector.shape_cast %4 : vector<1x1x256xf32> to vector<1x256xf32>
    %6 = vector.broadcast %5 : vector<1x256xf32> to vector<2x256xf32>
    %7 = arith.addf %3, %6 : vector<2x256xf32>
    %cst_7 = arith.constant 0.000000e+00 : f32
    %8 = vector.broadcast %cst_7 : f32 to vector<2x256xf32>
    %9 = arith.cmpf ogt, %7, %8 : vector<2x256xf32>
    %cst_8 = arith.constant 0.00999999977 : f32
    %10 = vector.broadcast %cst_8 : f32 to vector<2x256xf32>
    %11 = arith.mulf %10, %7 : vector<2x256xf32>
    %12 = arith.select %9, %7, %11 : vector<2x256xi1>, vector<2x256xf32>
    %c0_9 = arith.constant 0 : index
    %c0_10 = arith.constant 0 : index
    %c0_11 = arith.constant 0 : index
    %c0_12 = arith.constant 0 : index
    %13 = vector.load %arg7[%c0_9, %c0_10, %c0_11, %c0_12] : memref<2x1x256x256xf32, #tpu.memory_space<vmem>>, vector<1x1x256x256xf32>
    %14 = vector.shape_cast %13 : vector<1x1x256x256xf32> to vector<256x256xf32>
    %cst_13 = arith.constant dense<0.000000e+00> : vector<2x256xf32>
    %15 = tpu.matmul %12, %14, %cst_13 {dimension_numbers = #tpu.dot_dimension_numbers<[1], [0], [0], [1], [0, 0, 1, 1], [], []>} : vector<2x256xf32>, vector<256x256xf32>, vector<2x256xf32> -> vector<2x256xf32>
    %c0_14 = arith.constant 0 : index
    %c0_15 = arith.constant 0 : index
    %c0_16 = arith.constant 0 : index
    %c0_17 = arith.constant 0 : index
    %16 = vector.load %arg8[%c0_14, %c0_15, %c0_16, %c0_17] : memref<2x1x1x256xf32, #tpu.memory_space<vmem>>, vector<1x1x1x256xf32>
    %17 = vector.shape_cast %16 : vector<1x1x1x256xf32> to vector<1x256xf32>
    %18 = vector.broadcast %17 : vector<1x256xf32> to vector<2x256xf32>
    %19 = arith.addf %15, %18 : vector<2x256xf32>
    %cst_18 = arith.constant 0.000000e+00 : f32
    %20 = vector.broadcast %cst_18 : f32 to vector<2x256xf32>
    %21 = arith.cmpf ogt, %19, %20 : vector<2x256xf32>
    %cst_19 = arith.constant 0.00999999977 : f32
    %22 = vector.broadcast %cst_19 : f32 to vector<2x256xf32>
    %23 = arith.mulf %22, %19 : vector<2x256xf32>
    %24 = arith.select %21, %19, %23 : vector<2x256xi1>, vector<2x256xf32>
    %c1 = arith.constant 1 : index
    %c0_20 = arith.constant 0 : index
    %c0_21 = arith.constant 0 : index
    %c0_22 = arith.constant 0 : index
    %25 = vector.load %arg7[%c1, %c0_20, %c0_21, %c0_22] : memref<2x1x256x256xf32, #tpu.memory_space<vmem>>, vector<1x1x256x256xf32>
    %26 = vector.shape_cast %25 : vector<1x1x256x256xf32> to vector<256x256xf32>
    %cst_23 = arith.constant dense<0.000000e+00> : vector<2x256xf32>
    %27 = tpu.matmul %24, %26, %cst_23 {dimension_numbers = #tpu.dot_dimension_numbers<[1], [0], [0], [1], [0, 0, 1, 1], [], []>} : vector<2x256xf32>, vector<256x256xf32>, vector<2x256xf32> -> vector<2x256xf32>
    %c1_24 = arith.constant 1 : index
    %c0_25 = arith.constant 0 : index
    %c0_26 = arith.constant 0 : index
    %c0_27 = arith.constant 0 : index
    %28 = vector.load %arg8[%c1_24, %c0_25, %c0_26, %c0_27] : memref<2x1x1x256xf32, #tpu.memory_space<vmem>>, vector<1x1x1x256xf32>
    %29 = vector.shape_cast %28 : vector<1x1x1x256xf32> to vector<1x256xf32>
    %30 = vector.broadcast %29 : vector<1x256xf32> to vector<2x256xf32>
    %31 = arith.addf %27, %30 : vector<2x256xf32>
    %cst_28 = arith.constant 0.000000e+00 : f32
    %32 = vector.broadcast %cst_28 : f32 to vector<2x256xf32>
    %33 = arith.cmpf ogt, %31, %32 : vector<2x256xf32>
    %cst_29 = arith.constant 0.00999999977 : f32
    %34 = vector.broadcast %cst_29 : f32 to vector<2x256xf32>
    %35 = arith.mulf %34, %31 : vector<2x256xf32>
    %36 = arith.select %33, %31, %35 : vector<2x256xi1>, vector<2x256xf32>
    %c0_30 = arith.constant 0 : index
    %c0_31 = arith.constant 0 : index
    %c0_32 = arith.constant 0 : index
    %37 = vector.load %arg9[%c0_30, %c0_31, %c0_32] : memref<1x256x128xf32, #tpu.memory_space<vmem>>, vector<1x256x128xf32>
    %38 = vector.shape_cast %37 : vector<1x256x128xf32> to vector<256x128xf32>
    %cst_33 = arith.constant dense<0.000000e+00> : vector<2x128xf32>
    %39 = tpu.matmul %36, %38, %cst_33 {dimension_numbers = #tpu.dot_dimension_numbers<[1], [0], [0], [1], [0, 0, 1, 1], [], []>} : vector<2x256xf32>, vector<256x128xf32>, vector<2x128xf32> -> vector<2x128xf32>
    %c0_34 = arith.constant 0 : index
    %c0_35 = arith.constant 0 : index
    %c0_36 = arith.constant 0 : index
    %40 = vector.load %arg10[%c0_34, %c0_35, %c0_36] : memref<1x1x128xf32, #tpu.memory_space<vmem>>, vector<1x1x128xf32>
    %41 = vector.shape_cast %40 : vector<1x1x128xf32> to vector<1x128xf32>
    %42 = vector.broadcast %41 : vector<1x128xf32> to vector<2x128xf32>
    %43 = arith.addf %39, %42 : vector<2x128xf32>
    %c0_37 = arith.constant 0 : index
    %c0_38 = arith.constant 0 : index
    %44 = vector.load %arg2[%c0_37, %c0_38] : memref<1x128xf32, #tpu.memory_space<vmem>>, vector<1x128xf32>
    %45 = vector.broadcast %44 : vector<1x128xf32> to vector<2x128xf32>
    %46 = arith.mulf %43, %45 : vector<2x128xf32>
    %c0_39 = arith.constant 0 : index
    %c0_40 = arith.constant 0 : index
    %47 = vector.load %arg3[%c0_39, %c0_40] : memref<2x128xf32, #tpu.memory_space<vmem>>, vector<2x128xf32>
    %48 = arith.addf %46, %47 : vector<2x128xf32>
    %c0_41 = arith.constant 0 : index
    %c0_42 = arith.constant 0 : index
    %49 = vector.load %arg4[%c0_41, %c0_42] : memref<1x128xf32, #tpu.memory_space<vmem>>, vector<1x128xf32>
    %cst_43 = arith.constant 0.000000e+00 : f32
    %50 = vector.broadcast %cst_43 : f32 to vector<1x128xf32>
    %51 = arith.cmpf ogt, %49, %50 : vector<1x128xf32>
    %52 = arith.negf %48 : vector<2x128xf32>
    %53 = math.exp %52 : vector<2x128xf32>
    %cst_44 = arith.constant 1.000000e+00 : f32
    %54 = vector.broadcast %cst_44 : f32 to vector<2x128xf32>
    %55 = arith.addf %54, %53 : vector<2x128xf32>
    %56 = arith.divf %54, %55 : vector<2x128xf32>
    %57 = vector.shape_cast %51 : vector<1x128xi1> to vector<1x128xi1>
    %58 = vector.broadcast %57 : vector<1x128xi1> to vector<2x128xi1>
    %59 = arith.select %58, %56, %48 : vector<2x128xi1>, vector<2x128xf32>
    %c0_45 = arith.constant 0 : index
    %c0_46 = arith.constant 0 : index
    %60 = vector.load %arg11[%c0_45, %c0_46] : memref<2x128xf32, #tpu.memory_space<vmem>>, vector<2x128xf32>
    tpu.vector_store %arg11[%c0_45, %c0_46], %59 {strides = array<i32>} : memref<2x128xf32, #tpu.memory_space<vmem>>, vector<2x128xf32>,
    return
  }
  func.func @transform_0(%arg0: i32) -> (i32, i32) {
    %c0_i32 = arith.constant 0 : i32
    %c0_i32_0 = arith.constant 0 : i32
    %c0_i32_1 = arith.constant 0 : i32
    return %c0_i32, %c0_i32_0 : i32, i32
  }
  func.func @transform_1(%arg0: i32) -> (i32, i32) {
    %c0_i32 = arith.constant 0 : i32
    %c0_i32_0 = arith.constant 0 : i32
    %c0_i32_1 = arith.constant 0 : i32
    return %c0_i32, %c0_i32_0 : i32, i32
  }
  func.func @transform_2(%arg0: i32) -> (i32, i32) {
    %c0_i32 = arith.constant 0 : i32
    %c0_i32_0 = arith.constant 0 : i32
    %c0_i32_1 = arith.constant 0 : i32
    return %c0_i32, %c0_i32_0 : i32, i32
  }
  func.func @transform_3(%arg0: i32) -> (i32, i32) {
    %c0_i32 = arith.constant 0 : i32
    %c0_i32_0 = arith.constant 0 : i32
    %c0_i32_1 = arith.constant 0 : i32
    return %c0_i32, %c0_i32_0 : i32, i32
  }
  func.func @transform_4(%arg0: i32) -> (i32, i32, i32) {
    %c0_i32 = arith.constant 0 : i32
    %c0_i32_0 = arith.constant 0 : i32
    %c0_i32_1 = arith.constant 0 : i32
    return %arg0, %c0_i32, %c0_i32_0 : i32, i32, i32
  }
  func.func @transform_5(%arg0: i32) -> (i32, i32, i32) {
    %c0_i32 = arith.constant 0 : i32
    %c0_i32_0 = arith.constant 0 : i32
    %c0_i32_1 = arith.constant 0 : i32
    return %arg0, %c0_i32, %c0_i32_0 : i32, i32, i32
  }
  func.func @transform_6(%arg0: i32) -> (i32, i32, i32, i32) {
    %c0_i32 = arith.constant 0 : i32
    %c0_i32_0 = arith.constant 0 : i32
    %c0_i32_1 = arith.constant 0 : i32
    %c0_i32_2 = arith.constant 0 : i32
    return %c0_i32, %arg0, %c0_i32_0, %c0_i32_1 : i32, i32, i32, i32
  }
  func.func @transform_7(%arg0: i32) -> (i32, i32, i32, i32) {
    %c0_i32 = arith.constant 0 : i32
    %c0_i32_0 = arith.constant 0 : i32
    %c0_i32_1 = arith.constant 0 : i32
    %c0_i32_2 = arith.constant 0 : i32
    return %c0_i32, %arg0, %c0_i32_0, %c0_i32_1 : i32, i32, i32, i32
  }
  func.func @transform_8(%arg0: i32) -> (i32, i32, i32) {
    %c0_i32 = arith.constant 0 : i32
    %c0_i32_0 = arith.constant 0 : i32
    %c0_i32_1 = arith.constant 0 : i32
    return %arg0, %c0_i32, %c0_i32_0 : i32, i32, i32
  }
  func.func @transform_9(%arg0: i32) -> (i32, i32, i32) {
    %c0_i32 = arith.constant 0 : i32
    %c0_i32_0 = arith.constant 0 : i32
    %c0_i32_1 = arith.constant 0 : i32
    return %arg0, %c0_i32, %c0_i32_0 : i32, i32, i32
  }
  func.func @transform_10(%arg0: i32) -> (i32, i32) {
    %c0_i32 = arith.constant 0 : i32
    %c0_i32_0 = arith.constant 0 : i32
    return %c0_i32, %arg0 : i32, i32
  }
}

</mosaic_0001>

<llo_original>
// kernel: tpu_custom_call.1
$region0: #{tpu_custom_call.1}
  #allocation0 [shape = 'u32[]', space=smem, size = 0x4, offset = 0x4, fixed_abs, tag = 'smem constant byte address 0x4 - core index']
  #allocation1 [shape = 'u32[144,128]{1,0:T(1,128)}', space=vmem, size = 0x12000, scoped, tag = 'internal scratch']
  #allocation9 [shape = 's32[]', space=sflag, size = 0x4, offset = 0, fixed_abs, tag = 'sflag constant byte address 0x0 - dummy sync flag']
  %s0 = inlined_call_operand.vmem [shape: f32[2,12], index: 0, kind: input, shape index: {}]
  %s1 = inlined_call_operand.vmem [shape: f32[1,128], index: 1, kind: input, shape index: {}]
  %s2 = inlined_call_operand.vmem [shape: f32[2,128], index: 2, kind: input, shape index: {}]
  %s3 = inlined_call_operand.vmem [shape: f32[1,128], index: 3, kind: input, shape index: {}]
  %s4 = inlined_call_operand.vmem [shape: f32[2,12,256], index: 4, kind: input, shape index: {}]
  %s5 = inlined_call_operand.vmem [shape: f32[2,1,256], index: 5, kind: input, shape index: {}]
  %s6 = inlined_call_operand.hbm [shape: f32[2,2,256,256], index: 6, kind: input, shape index: {}]
  %s7 = inlined_call_operand.vmem [shape: f32[2,2,1,256], index: 7, kind: input, shape index: {}]
  %s8 = inlined_call_operand.hbm [shape: f32[2,256,128], index: 8, kind: input, shape index: {}]
  %s9 = inlined_call_operand.vmem [shape: f32[2,1,128], index: 9, kind: input, shape index: {}]
  %s10 = inlined_call_operand.hbm [shape: f32[2,256], index: 10, kind: output, shape index: {}]
  %s11 = sld [smem:[#allocation0]]
  $region115: #{tpu_custom_call.1} parent=0
    _
  %s13 = ssub.s32 1, %s11
  %s14 = scalar_select 0, %s13, %s11
  $region1: #{tpu_custom_call.1} parent=0
    #allocation2 [shape = 'u8[1048576]{0}', space=vmem, size = 0x100000, scoped, tag = 'input window, operand 6']
    #allocation3 [shape = 's32[2]{0}', space=sflag, size = 0x8, scoped, tag = 'scoped memory for tpu_custom_call.1']
    #allocation4 [shape = 's32[2]{0}', space=sflag, size = 0x8, scoped, tag = 'scoped memory for tpu_custom_call.1']
    #allocation5 [shape = 'u8[4096]{0}', space=vmem, size = 0x1000, scoped, tag = 'input window, operand 7']
    #allocation6 [shape = 'u8[262144]{0}', space=vmem, size = 0x40000, scoped, tag = 'input window, operand 8']
    #allocation7 [shape = 's32[2]{0}', space=sflag, size = 0x8, scoped, tag = 'scoped memory for tpu_custom_call.1']
    #allocation8 [shape = 'u8[2048]{0}', space=vmem, size = 0x800, scoped, tag = 'output window, operand 0']
    %15 = vsyncpa [#allocation3], 0
    %s16 = scalar_lea.sflag [#allocation3], 1
    %17 = vsyncpa %s16, 0
    %18 = vsyncpa [#allocation7], 0
    %s19 = scalar_lea.sflag [#allocation7], 1
    %20 = vsyncpa %s19, 0
    %21 = vsyncpa [#allocation4], 0
    %s22 = scalar_lea.sflag [#allocation4], 1
    %23 = vsyncpa %s22, 0
    loop: start=0, step=1, limit=4
    $region2: #{tpu_custom_call.1} parent=1 // loop_pre_header
      _
    $region3: #{tpu_custom_call.1} parent=1 // loop_header
      %s25 = sphi 0, %s29
      %p26 = scmp.ge.s32.totalorder %s25, 4
      %s33 = sphi 0, %s33
      %s35 = sphi 0, %s33
      %s36 = sphi 0, %s35
      %s50 = sphi 0, %s36
      %s54 = sphi 0, %s54
      %s56 = sphi 0, %s54
      %s57 = sphi 0, %s56
      %s71 = sphi 0, %s57
      %s75 = sphi 0, %s75
      %s77 = sphi 0, %s75
      %s78 = sphi 0, %s77
      %s92 = sphi 0, %s78
      %s96 = sphi 0, %s96
      %s98 = sphi 0, %s96
      %s99 = sphi 0, %s98
      %s113 = sphi 0, %s99
      %s119 = sphi 0, %s121
      %s122 = sphi 0, %s119
      %s123 = sphi 0, %s122
      %s139 = sphi 0, %s123
      %s145 = sphi 0, %s147
      %s148 = sphi 0, %s145
      %s149 = sphi 0, %s148
      %s165 = sphi 0, %s149
      %s171 = sphi 0, %s173
      %s174 = sphi 0, %s171
      %s175 = sphi 0, %s174
      %s191 = sphi 0, %s175
      %s197 = sphi 0, %s199
      %s200 = sphi 0, %s197
      %s201 = sphi 0, %s200
      %s217 = sphi 0, %s201
      %s223 = sphi 0, %s225
      %s226 = sphi 0, %s223
      %s227 = sphi 0, %s226
      %s243 = sphi 0, %s227
      %s249 = sphi 0, %s251
      %s252 = sphi 0, %s249
      %s253 = sphi 0, %s252
      %s269 = sphi 0, %s253
      %s275 = sphi 0, %s277
      %s278 = sphi 0, %s275
      %s279 = sphi 0, %s278
      %s295 = sphi 0, %s279
    $region4: #{tpu_custom_call.1} parent=1 // loop_header_branch
      %28 = sbr.rel (%p26) target = $region8
    $region5: #{tpu_custom_call.1} parent=1 // loop_body
      %s30 = ssub.s32 %s25, 1
      %s31 = ssub.s32 %s25, 2
      %s32 = sadd.s32 %s25, 1
      %s34 = sadd.s32 %s33, 1
      %p37 = scmp.eq.s32.totalorder %s25, 1
      %p38 = scmp.ne.s32.totalorder %s33, %s35
      %p39 = scmp.eq.s32.totalorder %s25, 0
      %p40 = por %p38, %p39
      %p41 = scmp.ne.s32.totalorder %s33, %s35
      %p42 = scmp.eq.s32.totalorder %s30, 1
      %p43 = por %p41, %p42
      %p44 = scmp.ne.s32.totalorder %s35, %s36
      %p45 = scmp.eq.s32.totalorder %s30, 0
      %p46 = por %p44, %p45
      %p47 = scmp.ne.s32.totalorder %s35, %s36
      %p48 = scmp.eq.s32.totalorder %s31, 1
      %p49 = por %p47, %p48
      %p51 = scmp.ne.s32.totalorder %s36, %s50
      %p52 = scmp.eq.s32.totalorder %s31, 0
      %p53 = por %p51, %p52
      %s55 = sadd.s32 %s54, 1
      %p58 = scmp.eq.s32.totalorder %s25, 1
      %p59 = scmp.ne.s32.totalorder %s54, %s56
      %p60 = scmp.eq.s32.totalorder %s25, 0
      %p61 = por %p59, %p60
      %p62 = scmp.ne.s32.totalorder %s54, %s56
      %p63 = scmp.eq.s32.totalorder %s30, 1
      %p64 = por %p62, %p63
      %p65 = scmp.ne.s32.totalorder %s56, %s57
      %p66 = scmp.eq.s32.totalorder %s30, 0
      %p67 = por %p65, %p66
      %p68 = scmp.ne.s32.totalorder %s56, %s57
      %p69 = scmp.eq.s32.totalorder %s31, 1
      %p70 = por %p68, %p69
      %p72 = scmp.ne.s32.totalorder %s57, %s71
      %p73 = scmp.eq.s32.totalorder %s31, 0
      %p74 = por %p72, %p73
      %s76 = sadd.s32 %s75, 1
      %p79 = scmp.eq.s32.totalorder %s25, 1
      %p80 = scmp.ne.s32.totalorder %s75, %s77
      %p81 = scmp.eq.s32.totalorder %s25, 0
      %p82 = por %p80, %p81
      %p83 = scmp.ne.s32.totalorder %s75, %s77
      %p84 = scmp.eq.s32.totalorder %s30, 1
      %p85 = por %p83, %p84
      %p86 = scmp.ne.s32.totalorder %s77, %s78
      %p87 = scmp.eq.s32.totalorder %s30, 0
      %p88 = por %p86, %p87
      %p89 = scmp.ne.s32.totalorder %s77, %s78
      %p90 = scmp.eq.s32.totalorder %s31, 1
      %p91 = por %p89, %p90
      %p93 = scmp.ne.s32.totalorder %s78, %s92
      %p94 = scmp.eq.s32.totalorder %s31, 0
      %p95 = por %p93, %p94
      %s97 = sadd.s32 %s96, 1
      %p100 = scmp.eq.s32.totalorder %s25, 1
      %p101 = scmp.ne.s32.totalorder %s96, %s98
      %p102 = scmp.eq.s32.totalorder %s25, 0
      %p103 = por %p101, %p102
      %p104 = scmp.ne.s32.totalorder %s96, %s98
      %p105 = scmp.eq.s32.totalorder %s30, 1
      %p106 = por %p104, %p105
      %p107 = scmp.ne.s32.totalorder %s98, %s99
      %p108 = scmp.eq.s32.totalorder %s30, 0
      %p109 = por %p107, %p108
      %p110 = scmp.ne.s32.totalorder %s98, %s99
      %p111 = scmp.eq.s32.totalorder %s31, 1
      %p112 = por %p110, %p111
      %p114 = scmp.ne.s32.totalorder %s99, %s113
      %p115 = scmp.eq.s32.totalorder %s31, 0
      %p116 = por %p114, %p115
      %s117 = ssub.s32 %s25, %s32
      %p118 = scmp.eq.s32.totalorder %s117, 0
      %s120 = sadd.s32 %s119, 1
      %s121 = scalar_select %p118, %s119, %s120
      %p124 = pneg %p118
      %p125 = scmp.eq.s32.totalorder %s25, 1
      %p126 = por %p124, %p125
      %p127 = scmp.ne.s32.totalorder %s119, %s122
      %p128 = scmp.eq.s32.totalorder %s25, 0
      %p129 = por %p127, %p128
      %p130 = scmp.ne.s32.totalorder %s119, %s122
      %p131 = scmp.eq.s32.totalorder %s30, 1
      %p132 = por %p130, %p131
      %p133 = scmp.ne.s32.totalorder %s122, %s123
      %p134 = scmp.eq.s32.totalorder %s30, 0
      %p135 = por %p133, %p134
      %p136 = scmp.ne.s32.totalorder %s122, %s123
      %p137 = scmp.eq.s32.totalorder %s31, 1
      %p138 = por %p136, %p137
      %p140 = scmp.ne.s32.totalorder %s123, %s139
      %p141 = scmp.eq.s32.totalorder %s31, 0
      %p142 = por %p140, %p141
      %s143 = ssub.s32 %s25, %s32
      %p144 = scmp.eq.s32.totalorder %s143, 0
      %s146 = sadd.s32 %s145, 1
      %s147 = scalar_select %p144, %s145, %s146
      %p150 = pneg %p144
      %p151 = scmp.eq.s32.totalorder %s25, 1
      %p152 = por %p150, %p151
      %p153 = scmp.ne.s32.totalorder %s145, %s148
      %p154 = scmp.eq.s32.totalorder %s25, 0
      %p155 = por %p153, %p154
      %p156 = scmp.ne.s32.totalorder %s145, %s148
      %p157 = scmp.eq.s32.totalorder %s30, 1
      %p158 = por %p156, %p157
      %p159 = scmp.ne.s32.totalorder %s148, %s149
      %p160 = scmp.eq.s32.totalorder %s30, 0
      %p161 = por %p159, %p160
      %p162 = scmp.ne.s32.totalorder %s148, %s149
      %p163 = scmp.eq.s32.totalorder %s31, 1
      %p164 = por %p162, %p163
      %p166 = scmp.ne.s32.totalorder %s149, %s165
      %p167 = scmp.eq.s32.totalorder %s31, 0
      %p168 = por %p166, %p167
      %s169 = ssub.s32 %s25, %s32
      %p170 = scmp.eq.s32.totalorder %s169, 0
      %s172 = sadd.s32 %s171, 1
      %s173 = scalar_select %p170, %s171, %s172
      %p176 = pneg %p170
      %p177 = scmp.eq.s32.totalorder %s25, 1
      %p178 = por %p176, %p177
      %p179 = scmp.ne.s32.totalorder %s171, %s174
      %p180 = scmp.eq.s32.totalorder %s25, 0
      %p181 = por %p179, %p180
      %p182 = scmp.ne.s32.totalorder %s171, %s174
      %p183 = scmp.eq.s32.totalorder %s30, 1
      %p184 = por %p182, %p183
      %p185 = scmp.ne.s32.totalorder %s174, %s175
      %p186 = scmp.eq.s32.totalorder %s30, 0
      %p187 = por %p185, %p186
      %p188 = scmp.ne.s32.totalorder %s174, %s175
      %p189 = scmp.eq.s32.totalorder %s31, 1
      %p190 = por %p188, %p189
      %p192 = scmp.ne.s32.totalorder %s175, %s191
      %p193 = scmp.eq.s32.totalorder %s31, 0
      %p194 = por %p192, %p193
      %s195 = ssub.s32 %s25, %s32
      %p196 = scmp.eq.s32.totalorder %s195, 0
      %s198 = sadd.s32 %s197, 1
      %s199 = scalar_select %p196, %s197, %s198
      %p202 = pneg %p196
      %p203 = scmp.eq.s32.totalorder %s25, 1
      %p204 = por %p202, %p203
      %p205 = scmp.ne.s32.totalorder %s197, %s200
      %p206 = scmp.eq.s32.totalorder %s25, 0
      %p207 = por %p205, %p206
      %p208 = scmp.ne.s32.totalorder %s197, %s200
      %p209 = scmp.eq.s32.totalorder %s30, 1
      %p210 = por %p208, %p209
      %p211 = scmp.ne.s32.totalorder %s200, %s201
      %p212 = scmp.eq.s32.totalorder %s30, 0
      %p213 = por %p211, %p212
      %p214 = scmp.ne.s32.totalorder %s200, %s201
      %p215 = scmp.eq.s32.totalorder %s31, 1
      %p216 = por %p214, %p215
      %p218 = scmp.ne.s32.totalorder %s201, %s217
      %p219 = scmp.eq.s32.totalorder %s31, 0
      %p220 = por %p218, %p219
      %s221 = ssub.s32 %s25, %s32
      %p222 = scmp.eq.s32.totalorder %s221, 0
      %s224 = sadd.s32 %s223, 1
      %s225 = scalar_select %p222, %s223, %s224
      %p228 = pneg %p222
      %p229 = scmp.eq.s32.totalorder %s25, 1
      %p230 = por %p228, %p229
      %p231 = scmp.ne.s32.totalorder %s223, %s226
      %p232 = scmp.eq.s32.totalorder %s25, 0
      %p233 = por %p231, %p232
      %p234 = scmp.ne.s32.totalorder %s223, %s226
      %p235 = scmp.eq.s32.totalorder %s30, 1
      %p236 = por %p234, %p235
      %p237 = scmp.ne.s32.totalorder %s226, %s227
      %p238 = scmp.eq.s32.totalorder %s30, 0
      %p239 = por %p237, %p238
      %p240 = scmp.ne.s32.totalorder %s226, %s227
      %p241 = scmp.eq.s32.totalorder %s31, 1
      %p242 = por %p240, %p241
      %p244 = scmp.ne.s32.totalorder %s227, %s243
      %p245 = scmp.eq.s32.totalorder %s31, 0
      %p246 = por %p244, %p245
      %s247 = ssub.s32 %s25, %s32
      %p248 = scmp.eq.s32.totalorder %s247, 0
      %s250 = sadd.s32 %s249, 1
      %s251 = scalar_select %p248, %s249, %s250
      %p254 = pneg %p248
      %p255 = scmp.eq.s32.totalorder %s25, 1
      %p256 = por %p254, %p255
      %p257 = scmp.ne.s32.totalorder %s249, %s252
      %p258 = scmp.eq.s32.totalorder %s25, 0
      %p259 = por %p257, %p258
      %p260 = scmp.ne.s32.totalorder %s249, %s252
      %p261 = scmp.eq.s32.totalorder %s30, 1
      %p262 = por %p260, %p261
      %p263 = scmp.ne.s32.totalorder %s252, %s253
      %p264 = scmp.eq.s32.totalorder %s30, 0
      %p265 = por %p263, %p264
      %p266 = scmp.ne.s32.totalorder %s252, %s253
      %p267 = scmp.eq.s32.totalorder %s31, 1
      %p268 = por %p266, %p267
      %p270 = scmp.ne.s32.totalorder %s253, %s269
      %p271 = scmp.eq.s32.totalorder %s31, 0
      %p272 = por %p270, %p271
      %s273 = ssub.s32 %s25, %s32
      %p274 = scmp.eq.s32.totalorder %s273, 0
      %s276 = sadd.s32 %s275, 1
      %s277 = scalar_select %p274, %s275, %s276
      %p280 = pneg %p274
      %p281 = scmp.eq.s32.totalorder %s25, 1
      %p282 = por %p280, %p281
      %p283 = scmp.ne.s32.totalorder %s275, %s278
      %p284 = scmp.eq.s32.totalorder %s25, 0
      %p285 = por %p283, %p284
      %p286 = scmp.ne.s32.totalorder %s275, %s278
      %p287 = scmp.eq.s32.totalorder %s30, 1
      %p288 = por %p286, %p287
      %p289 = scmp.ne.s32.totalorder %s278, %s279
      %p290 = scmp.eq.s32.totalorder %s30, 0
      %p291 = por %p289, %p290
      %p292 = scmp.ne.s32.totalorder %s278, %s279
      %p293 = scmp.eq.s32.totalorder %s31, 1
      %p294 = por %p292, %p293
      %p296 = scmp.ne.s32.totalorder %s279, %s295
      %p297 = scmp.eq.s32.totalorder %s31, 0
      %p298 = por %p296, %p297
      %p299 = scmp.le.s32.totalorder 1, %s25
      %p300 = scmp.lt.s32.totalorder %s25, 3
      %p301 = pnand %p299, %p300
      %p302 = pneg %p301
      // Predicated region
      $region9: #{tpu_custom_call.1} parent=5 // pred_check
        _
      $region10: #{tpu_custom_call.1} parent=5 // pred_check_branch
        %304 = sbr.rel (%p301) target = $region12
      $region11: #{tpu_custom_call.1} parent=5 // pred_region
        %s305 = ssub.s32 %s25, 1
        // Predicated region
        $region13: #{tpu_custom_call.1} parent=11 // pred_check
          %p306 = pneg %p46
        $region14: #{tpu_custom_call.1} parent=11 // pred_check_branch
          %308 = sbr.rel (%p306) target = $region16
        $region15: #{tpu_custom_call.1} parent=11 // pred_region
          _
        $region16: #{tpu_custom_call.1} parent=11 // pred_fallthru
          _
        // Predicated region
        $region17: #{tpu_custom_call.1} parent=11 // pred_check
          %p309 = pneg %p67
        $region18: #{tpu_custom_call.1} parent=11 // pred_check_branch
          %311 = sbr.rel (%p309) target = $region20
        $region19: #{tpu_custom_call.1} parent=11 // pred_region
          _
        $region20: #{tpu_custom_call.1} parent=11 // pred_fallthru
          _
        // Predicated region
        $region21: #{tpu_custom_call.1} parent=11 // pred_check
          %p312 = pneg %p88
        $region22: #{tpu_custom_call.1} parent=11 // pred_check_branch
          %314 = sbr.rel (%p312) target = $region24
        $region23: #{tpu_custom_call.1} parent=11 // pred_region
          _
        $region24: #{tpu_custom_call.1} parent=11 // pred_fallthru
          _
        // Predicated region
        $region25: #{tpu_custom_call.1} parent=11 // pred_check
          %p315 = pneg %p109
        $region26: #{tpu_custom_call.1} parent=11 // pred_check_branch
          %317 = sbr.rel (%p315) target = $region28
        $region27: #{tpu_custom_call.1} parent=11 // pred_region
          _
        $region28: #{tpu_custom_call.1} parent=11 // pred_fallthru
          _
      $region12: #{tpu_custom_call.1} parent=5 // pred_fallthru
        _
      %p318 = scmp.lt.s32.totalorder %s25, 2
      // Predicated region
      $region29: #{tpu_custom_call.1} parent=5 // pred_check
        %p319 = pneg %p318
      $region30: #{tpu_custom_call.1} parent=5 // pred_check_branch
        %321 = sbr.rel (%p319) target = $region32
      $region31: #{tpu_custom_call.1} parent=5 // pred_region
        // Predicated region
        $region33: #{tpu_custom_call.1} parent=31 // pred_check
          %p322 = pneg %p129
        $region34: #{tpu_custom_call.1} parent=31 // pred_check_branch
          %324 = sbr.rel (%p322) target = $region36
        $region35: #{tpu_custom_call.1} parent=31 // pred_region
          %p325 = scmp.lt.s32.totalorder %s25, 1
          %s326 = scalar_select %p325, %s25, 1
          %s327 = smul.addr %s326, 4
          %s328 = smul.addr %s327, 8
          %s329 = scalar_lea.vmem %s4, %s328
        $region36: #{tpu_custom_call.1} parent=31 // pred_fallthru
          _
        // Predicated region
        $region37: #{tpu_custom_call.1} parent=31 // pred_check
          %p330 = pneg %p155
        $region38: #{tpu_custom_call.1} parent=31 // pred_check_branch
          %332 = sbr.rel (%p330) target = $region40
        $region39: #{tpu_custom_call.1} parent=31 // pred_region
          %p333 = scmp.lt.s32.totalorder %s25, 1
          %s334 = scalar_select %p333, %s25, 1
          %s335 = smul.addr %s334, 2
          %s336 = scalar_lea.vmem %s5, %s335
        $region40: #{tpu_custom_call.1} parent=31 // pred_fallthru
          _
        // Predicated region
        $region41: #{tpu_custom_call.1} parent=31 // pred_check
          %p337 = pneg %p181
        $region42: #{tpu_custom_call.1} parent=31 // pred_check_branch
          %339 = sbr.rel (%p337) target = $region44
        $region43: #{tpu_custom_call.1} parent=31 // pred_region
          #allocation10 [shape = 'u32[6]{0}', space=smem, size = 0x18, scoped, tag = 'DMA stride descriptor']
          %s340 = sand.u32 %s171, 1
          %s341 = scalar_lea.sflag [#allocation3], %s340
          %s342 = sand.u32 %s171, 1
          %s343 = smul.addr %s342, 1024
          %s344 = scalar_lea.vmem [#allocation2], %s343
          %s346 = ssub.s32 16384, 16384
          %347 = vsyncadd %s341, %s346
          %s348 = smul.addr %s25, 64
          %s349 = smul.addr %s348, 128
          %s350 = scalar_lea.hbm %s6, %s349
          %s352 = sshll.u32 1, 14
          %s353 = sxor.u32 4294967295, %s352
          %s355 = sld [smem:[#allocation0]]
          %s356 = sadd.s32 2, %s355
          %s358 = sshll.u32 7, 26
          %s359 = sxor.u32 4294967295, %s358
          %s360 = sand.u32 0, %s359
          %s361 = sshll.u32 %s356, 26
          %s362 = sor.u32 %s360, %s361
          %s363 = sshll.u32 %s344, 4
          %s364 = int_to_ptr.vmem [resolvable:$true] %s363
          %370 = sst [smem:[#allocation10]] 16384
          %s371 = scalar_lea.smem [#allocation10], 1
          %372 = sst [smem:[%s371]] 8192
          %s373 = scalar_lea.smem [#allocation10], 2
          %374 = sst [smem:[%s373]] 32
          %s375 = scalar_lea.smem [#allocation10], 3
          %376 = sst [smem:[%s375]] 256
          %s377 = scalar_lea.smem [#allocation10], 4
          %378 = sst [smem:[%s377]] 256
          %s379 = scalar_lea.smem [#allocation10], 5
          %380 = sst [smem:[%s379]] 16
          %382 = dma.general %s350, 16384, %s364, %s341, [#allocation9], [#allocation10], %s362, 0
        $region44: #{tpu_custom_call.1} parent=31 // pred_fallthru
          _
        // Predicated region
        $region45: #{tpu_custom_call.1} parent=31 // pred_check
          %p383 = pneg %p207
        $region46: #{tpu_custom_call.1} parent=31 // pred_check_branch
          %385 = sbr.rel (%p383) target = $region48
        $region47: #{tpu_custom_call.1} parent=31 // pred_region
          %s386 = sand.u32 %s197, 1
          %s387 = sand.u32 %s197, 1
          %s388 = smul.addr %s387, 4
          %s389 = scalar_lea.vmem [#allocation5], %s388
          %s390 = smul.addr %s25, 2
          %s391 = scalar_lea.vmem %s7, %s390
          // Predicated region
          $region49: #{tpu_custom_call.1} parent=47 // pred_check
            _
          $region50: #{tpu_custom_call.1} parent=47 // pred_check_branch
            %393 = sbr.rel (0) target = $region52
          $region51: #{tpu_custom_call.1} parent=47 // pred_region
            // Predicated region
            $region53: #{tpu_custom_call.1} parent=51 // pred_check
              _
            $region54: #{tpu_custom_call.1} parent=51 // pred_check_branch
              %395 = sbr.rel target = $region56
            $region55: #{tpu_custom_call.1} parent=51 // pred_region
              // Predicated region
              $region68: #{tpu_custom_call.1} parent=55 // pred_check
                _
              $region69: #{tpu_custom_call.1} parent=55 // pred_check_branch
                %412 = sbr.rel (0) target = $region71
              $region70: #{tpu_custom_call.1} parent=55 // pred_region
                loop: start=0, step=1, limit=1
                $region72: #{tpu_custom_call.1} parent=70 // loop_pre_header
                  _
                $region73: #{tpu_custom_call.1} parent=70 // loop_header
                  %s415 = sphi 0, %s419
                  %p416 = scmp.ge.s32.totalorder %s415, 1
                  %s420 = sphi %s391, %s391
                  %s421 = sphi %s389, %s389
                $region74: #{tpu_custom_call.1} parent=70 // loop_header_branch
                  %418 = sbr.rel (%p416) target = $region78
                $region75: #{tpu_custom_call.1} parent=70 // loop_body
                  %v422 = vld [vmem:[%s420] sm:$0x3]
                  %423 = vst [vmem:[%s421] sm:$0x3] %v422
                  %v424 = vld [vmem:[%s420 + $0x4] sm:$0x3]
                  %425 = vst [vmem:[%s421 + $0x2] sm:$0x3] %v424
                $region76: #{tpu_custom_call.1} parent=70 // loop_footer
                  %s419 = sadd.s32 1, %s415
                $region77: #{tpu_custom_call.1} parent=70 // loop_footer_branch
                  %414 = sbr.rel target = $region73
                $region78: #{tpu_custom_call.1} parent=70 // loop_exit
                  _
              $region71: #{tpu_custom_call.1} parent=55 // pred_fallthru
                _
            $region56: #{tpu_custom_call.1} parent=51 // pred_fallthru
              _
            // Predicated region
            $region57: #{tpu_custom_call.1} parent=51 // pred_check
              _
            $region58: #{tpu_custom_call.1} parent=51 // pred_check_branch
              %397 = sbr.rel (0) target = $region60
            $region59: #{tpu_custom_call.1} parent=51 // pred_region
              loop: start=0, step=1, limit=1
              $region61: #{tpu_custom_call.1} parent=59 // loop_pre_header
                _
              $region62: #{tpu_custom_call.1} parent=59 // loop_header
                %s400 = sphi 0, %s404
                %p401 = scmp.ge.s32.totalorder %s400, 1
                %s405 = sphi %s391, %s391
                %s406 = sphi %s389, %s389
              $region63: #{tpu_custom_call.1} parent=59 // loop_header_branch
                %403 = sbr.rel (%p401) target = $region67
              $region64: #{tpu_custom_call.1} parent=59 // loop_body
                %v407 = vld [vmem:[%s405] sm:$0x3]
                %408 = vst [vmem:[%s406] sm:$0x3] %v407
                %v409 = vld [vmem:[%s405 + $0x4] sm:$0x3]
                %410 = vst [vmem:[%s406 + $0x2] sm:$0x3] %v409
              $region65: #{tpu_custom_call.1} parent=59 // loop_footer
                %s404 = sadd.s32 1, %s400
              $region66: #{tpu_custom_call.1} parent=59 // loop_footer_branch
                %399 = sbr.rel target = $region62
              $region67: #{tpu_custom_call.1} parent=59 // loop_exit
                _
            $region60: #{tpu_custom_call.1} parent=51 // pred_fallthru
              _
          $region52: #{tpu_custom_call.1} parent=47 // pred_fallthru
            _
          %426 = vnop
        $region48: #{tpu_custom_call.1} parent=31 // pred_fallthru
          _
        // Predicated region
        $region79: #{tpu_custom_call.1} parent=31 // pred_check
          %p427 = pneg %p233
        $region80: #{tpu_custom_call.1} parent=31 // pred_check_branch
          %429 = sbr.rel (%p427) target = $region82
        $region81: #{tpu_custom_call.1} parent=31 // pred_region
          %s430 = sand.u32 %s223, 1
          %s431 = scalar_lea.sflag [#allocation7], %s430
          %s432 = sand.u32 %s223, 1
          %s433 = smul.addr %s432, 256
          %s434 = scalar_lea.vmem [#allocation6], %s433
          %s436 = ssub.s32 4096, 4096
          %437 = vsyncadd %s431, %s436
          %s438 = smul.addr %s25, 32
          %s439 = smul.addr %s438, 128
          %s440 = scalar_lea.hbm %s8, %s439
          %s441 = sshll.u32 %s434, 4
          %s442 = int_to_ptr.vmem [resolvable:$true] %s441
          %447 = dma.hbm_to_vmem [thread:$0]  %s440, 4096, %s442, %s431, 128, 128, 8
        $region82: #{tpu_custom_call.1} parent=31 // pred_fallthru
          _
        // Predicated region
        $region83: #{tpu_custom_call.1} parent=31 // pred_check
          %p448 = pneg %p259
        $region84: #{tpu_custom_call.1} parent=31 // pred_check_branch
          %450 = sbr.rel (%p448) target = $region86
        $region85: #{tpu_custom_call.1} parent=31 // pred_region
          %p451 = scmp.lt.s32.totalorder %s25, 1
          %s452 = scalar_select %p451, %s25, 1
          %s453 = scalar_lea.vmem %s9, %s452
        $region86: #{tpu_custom_call.1} parent=31 // pred_fallthru
          _
      $region32: #{tpu_custom_call.1} parent=5 // pred_fallthru
        _
      %p454 = scmp.le.s32.totalorder 1, %s25
      %p455 = scmp.lt.s32.totalorder %s25, 3
      %p456 = pnand %p454, %p455
      %p457 = pneg %p456
      // Predicated region
      $region87: #{tpu_custom_call.1} parent=5 // pred_check
        _
      $region88: #{tpu_custom_call.1} parent=5 // pred_check_branch
        %459 = sbr.rel (%p456) target = $region90
      $region89: #{tpu_custom_call.1} parent=5 // pred_region
        %s460 = ssub.s32 %s25, 1
        %s461 = sand.u32 %s174, 1
        %s462 = scalar_lea.sflag [#allocation3], %s461
        %s463 = sand.u32 %s174, 1
        %s464 = smul.addr %s463, 1024
        %s465 = scalar_lea.vmem [#allocation2], %s464
        // Predicated region
        $region91: #{tpu_custom_call.1} parent=89 // pred_check
          %p466 = pneg %p187
        $region92: #{tpu_custom_call.1} parent=89 // pred_check_branch
          %468 = sbr.rel (%p466) target = $region94
        $region93: #{tpu_custom_call.1} parent=89 // pred_region
          %469 = dma.done %s462, 16384
        $region94: #{tpu_custom_call.1} parent=89 // pred_fallthru
          _
        %s470 = sand.u32 %s200, 1
        %s471 = sand.u32 %s200, 1
        %s472 = smul.addr %s471, 4
        %s473 = scalar_lea.vmem [#allocation5], %s472
        // Predicated region
        $region95: #{tpu_custom_call.1} parent=89 // pred_check
          %p474 = pneg %p213
        $region96: #{tpu_custom_call.1} parent=89 // pred_check_branch
          %476 = sbr.rel (%p474) target = $region98
        $region97: #{tpu_custom_call.1} parent=89 // pred_region
          _
        $region98: #{tpu_custom_call.1} parent=89 // pred_fallthru
          _
        %s477 = sand.u32 %s226, 1
        %s478 = scalar_lea.sflag [#allocation7], %s477
        %s479 = sand.u32 %s226, 1
        %s480 = smul.addr %s479, 256
        %s481 = scalar_lea.vmem [#allocation6], %s480
        // Predicated region
        $region99: #{tpu_custom_call.1} parent=89 // pred_check
          %p482 = pneg %p239
        $region100: #{tpu_custom_call.1} parent=89 // pred_check_branch
          %484 = sbr.rel (%p482) target = $region102
        $region101: #{tpu_custom_call.1} parent=89 // pred_region
          %485 = dma.done %s478, 4096
        $region102: #{tpu_custom_call.1} parent=89 // pred_fallthru
          _
        %p486 = pneg %p46
        %p487 = pneg %p43
        %p488 = pneg %p67
        %p489 = pneg %p64
        %p490 = pneg %p88
        %p491 = pneg %p85
        %p492 = pneg %p109
        %p493 = pneg %p106
        %p494 = scmp.lt.s32.totalorder %s30, 1
        %s495 = scalar_select %p494, %s30, 1
        %s496 = smul.addr %s495, 4
        %s497 = smul.addr %s496, 8
        %s498 = scalar_lea.vmem %s4, %s497
        %p499 = pneg %p135
        %p500 = pneg %p132
        %p501 = scmp.lt.s32.totalorder %s30, 1
        %s502 = scalar_select %p501, %s30, 1
        %s503 = smul.addr %s502, 2
        %s504 = scalar_lea.vmem %s5, %s503
        %p505 = pneg %p161
        %p506 = pneg %p158
        %s507 = sand.u32 %s174, 1
        %s508 = scalar_lea.sflag [#allocation3], %s507
        %s509 = sand.u32 %s174, 1
        %s510 = smul.addr %s509, 1024
        %s511 = scalar_lea.vmem [#allocation2], %s510
        %p512 = pneg %p187
        %p513 = pneg %p184
        %s514 = sand.u32 %s200, 1
        %s515 = sand.u32 %s200, 1
        %s516 = smul.addr %s515, 4
        %s517 = scalar_lea.vmem [#allocation5], %s516
        %p518 = pneg %p213
        %p519 = pneg %p210
        %s520 = sand.u32 %s226, 1
        %s521 = scalar_lea.sflag [#allocation7], %s520
        %s522 = sand.u32 %s226, 1
        %s523 = smul.addr %s522, 256
        %s524 = scalar_lea.vmem [#allocation6], %s523
        %p525 = pneg %p239
        %p526 = pneg %p236
        %p527 = scmp.lt.s32.totalorder %s30, 1
        %s528 = scalar_select %p527, %s30, 1
        %s529 = scalar_lea.vmem %s9, %s528
        %p530 = pneg %p265
        %p531 = pneg %p262
        %p532 = pneg %p291
        %p533 = pneg %p288
        %s534 = sand.u32 %s278, 1
        %s535 = scalar_lea.sflag [#allocation4], %s534
        %s536 = sand.u32 %s278, 1
        %s537 = smul.addr %s536, 2
        %s538 = scalar_lea.vmem [#allocation8], %s537
        %p539 = scmp.lt.s32.totalorder %s30, 1
        %s540 = scalar_select %p539, %s30, 1
        %s541 = smul.addr %s540, 4
        %s542 = smul.addr %s541, 8
        %s543 = scalar_lea.vmem %s4, %s542
        %p544 = scmp.lt.s32.totalorder %s30, 1
        %s545 = scalar_select %p544, %s30, 1
        %s546 = smul.addr %s545, 2
        %s547 = scalar_lea.vmem %s5, %s546
        %p548 = scmp.lt.s32.totalorder %s30, 1
        %s549 = scalar_select %p548, %s30, 1
        %s550 = scalar_lea.vmem %s9, %s549
        %v551 = vld [vmem:[%s0] sm:$0x3]
        %v552 = vld [vmem:[%s543] sm:$0xff]
        %v553 = vld [vmem:[%s543 + $0x8] sm:$0xff]
        %v554 = vld [vmem:[%s543 + $0x10] sm:$0xf]
        %v555 = vld [vmem:[%s543 + $0x18] sm:$0xf]
        %v556 = vld [vmem:[%s547] sm:$0x3]
        %v558 = vlaneseq
        %v559 = vshrl.u32 %v558, 7
        %v560 = vsub.s32 0, %v559
        %v561 = vrot.slane %v556, %v560
        %v562 = vlaneseq
        %v563 = vshrl.u32 %v562, 7
        %v564 = vsub.s32 1, %v563
        %v565 = vrot.slane %v556, %v564
        %vm568 = vcmask 97280
        %v570 = vsel %vm568, %v551, 0
        %vm572 = vcmask 1043456
        %v574 = vsel %vm572, %v554, 0
        %v577 = vsel %vm572, %v555, 0
        %579 = vmatprep.subr.mxu0 %v553
        %580 = vmatpush1.msra.mxu0 %v552
        %581 = vmatprep.subr.mxu0 %v577
        %582 = vmatpush1.msra.mxu0 %v574
        %583 = vmatprep.subr.mxu0 0.0
        %584 = vmatpush1.msra.mxu0 0.0
        %585 = vmatprep.subr.mxu0 0.0
        %586 = vmatpush1.msra.mxu0 0.0
        %587 = vmatprep.subr.mxu0 0.0
        %588 = vmatpush1.msra.mxu0 0.0
        %589 = vmatprep.subr.mxu0 0.0
        %590 = vmatpush1.msra.mxu0 0.0
        %591 = vmatprep.subr.mxu0 0.0
        %592 = vmatpush1.msra.mxu0 0.0
        %593 = vmatprep.subr.mxu0 0.0
        %594 = vmatpush1.msra.mxu0 0.0
        %595 = vmatprep.subr.mxu0 0.0
        %596 = vmatpush1.msra.mxu0 0.0
        %597 = vmatprep.subr.mxu0 0.0
        %598 = vmatpush1.msra.mxu0 0.0
        %599 = vmatprep.subr.mxu0 0.0
        %600 = vmatpush1.msra.mxu0 0.0
        %601 = vmatprep.subr.mxu0 0.0
        %602 = vmatpush1.msra.mxu0 0.0
        %603 = vmatprep.subr.mxu0 0.0
        %604 = vmatpush1.msra.mxu0 0.0
        %605 = vmatprep.subr.mxu0 0.0
        %606 = vmatpush1.msra.mxu0 0.0
        %607 = vmatprep.subr.mxu0 0.0
        %608 = vmatpush1.msra.mxu0 0.0
        %609 = vmatprep.subr.mxu0 0.0
        %610 = vmatpush1.msra.mxu0 0.0
        %611 = vmatprep.subr.mxu0 0.0
        %612 = vmatpush1.msra.mxu0 0.0
        %613 = vmatprep.subr.mxu0 0.0
        %614 = vmatpush1.msra.mxu0 0.0
        %615 = vmatprep.subr.mxu0 0.0
        %616 = vmatpush1.msra.mxu0 0.0
        %617 = vmatprep.subr.mxu0 0.0
        %618 = vmatpush1.msra.mxu0 0.0
        %619 = vmatprep.subr.mxu0 0.0
        %620 = vmatpush1.msra.mxu0 0.0
        %621 = vmatprep.subr.mxu0 0.0
        %622 = vmatpush1.msra.mxu0 0.0
        %623 = vmatprep.subr.mxu0 0.0
        %624 = vmatpush1.msra.mxu0 0.0
        %625 = vmatprep.subr.mxu0 0.0
        %626 = vmatpush1.msra.mxu0 0.0
        %627 = vmatprep.subr.mxu0 0.0
        %628 = vmatpush1.msra.mxu0 0.0
        %629 = vmatprep.subr.mxu0 0.0
        %630 = vmatpush1.msra.mxu0 0.0
        %631 = vmatprep.subr.mxu0 0.0
        %632 = vmatpush1.msra.mxu0 0.0
        %633 = vmatprep.subr.mxu0 0.0
        %634 = vmatpush1.msra.mxu0 0.0
        %635 = vmatprep.subr.mxu0 0.0
        %636 = vmatpush1.msra.mxu0 0.0
        %637 = vmatprep.subr.mxu0 0.0
        %638 = vmatpush1.msra.mxu0 0.0
        %639 = vmatprep.subr.mxu0 0.0
        %640 = vmatpush1.msra.mxu0 0.0
        %641 = vmatprep.subr.mxu0 0.0
        %642 = vmatpush1.msra.mxu0 0.0
        %643 = vmatprep.mubr.f32.mxu0 0.0
        %644 = vmatmul.mubr.f32.gmra.mrb[0].mxu0 %v570
        %v645 = vpop.f32.mrb[0].mxu0
        %v646 = vadd.f32 %v561, %v645
        %v647 = vpop.f32.mrb[0].mxu0
        %v648 = vadd.f32 %v565, %v647
        %649 = vdwg.mxu0
        %vm650 = vcmp.gt.f32.partialorder %v646, 0.0
        %vm651 = vcmp.gt.f32.partialorder %v648, 0.0
        %v652 = vmul.f32 %v646, 0.01
        %v653 = vmul.f32 %v648, 0.01
        %v654 = vsel %vm650, %v646, %v652
        %v655 = vsel %vm651, %v648, %v653
        %v656 = vld [vmem:[%s465] sm:$0xff]
        %v657 = vld [vmem:[%s465 + $0x8] sm:$0xff]
        %v658 = vld [vmem:[%s465 + $0x10] sm:$0xff]
        %v659 = vld [vmem:[%s465 + $0x18] sm:$0xff]
        %v660 = vld [vmem:[%s465 + $0x20] sm:$0xff]
        %v661 = vld [vmem:[%s465 + $0x28] sm:$0xff]
        %v662 = vld [vmem:[%s465 + $0x30] sm:$0xff]
        %v663 = vld [vmem:[%s465 + $0x38] sm:$0xff]
        %v664 = vld [vmem:[%s465 + $0x40] sm:$0xff]
        %v665 = vld [vmem:[%s465 + $0x48] sm:$0xff]
        %v666 = vld [vmem:[%s465 + $0x50] sm:$0xff]
        %v667 = vld [vmem:[%s465 + $0x58] sm:$0xff]
        %v668 = vld [vmem:[%s465 + $0x60] sm:$0xff]
        %v669 = vld [vmem:[%s465 + $0x68] sm:$0xff]
        %v670 = vld [vmem:[%s465 + $0x70] sm:$0xff]
        %v671 = vld [vmem:[%s465 + $0x78] sm:$0xff]
        %v672 = vld [vmem:[%s465 + $0x80] sm:$0xff]
        %v673 = vld [vmem:[%s465 + $0x88] sm:$0xff]
        %v674 = vld [vmem:[%s465 + $0x90] sm:$0xff]
        %v675 = vld [vmem:[%s465 + $0x98] sm:$0xff]
        %v676 = vld [vmem:[%s465 + $0xa0] sm:$0xff]
        %v677 = vld [vmem:[%s465 + $0xa8] sm:$0xff]
        %v678 = vld [vmem:[%s465 + $0xb0] sm:$0xff]
        %v679 = vld [vmem:[%s465 + $0xb8] sm:$0xff]
        %v680 = vld [vmem:[%s465 + $0xc0] sm:$0xff]
        %v681 = vld [vmem:[%s465 + $0xc8] sm:$0xff]
        %v682 = vld [vmem:[%s465 + $0xd0] sm:$0xff]
        %v683 = vld [vmem:[%s465 + $0xd8] sm:$0xff]
        %v684 = vld [vmem:[%s465 + $0xe0] sm:$0xff]
        %v685 = vld [vmem:[%s465 + $0xe8] sm:$0xff]
        %v686 = vld [vmem:[%s465 + $0xf0] sm:$0xff]
        %v687 = vld [vmem:[%s465 + $0xf8] sm:$0xff]
        %v688 = vld [vmem:[%s465 + $0x100] sm:$0xff]
        %v689 = vld [vmem:[%s465 + $0x108] sm:$0xff]
        %v690 = vld [vmem:[%s465 + $0x110] sm:$0xff]
        %v691 = vld [vmem:[%s465 + $0x118] sm:$0xff]
        %v692 = vld [vmem:[%s465 + $0x120] sm:$0xff]
        %v693 = vld [vmem:[%s465 + $0x128] sm:$0xff]
        %v694 = vld [vmem:[%s465 + $0x130] sm:$0xff]
        %v695 = vld [vmem:[%s465 + $0x138] sm:$0xff]
        %v696 = vld [vmem:[%s465 + $0x140] sm:$0xff]
        %v697 = vld [vmem:[%s465 + $0x148] sm:$0xff]
        %v698 = vld [vmem:[%s465 + $0x150] sm:$0xff]
        %v699 = vld [vmem:[%s465 + $0x158] sm:$0xff]
        %v700 = vld [vmem:[%s465 + $0x160] sm:$0xff]
        %v701 = vld [vmem:[%s465 + $0x168] sm:$0xff]
        %v702 = vld [vmem:[%s465 + $0x170] sm:$0xff]
        %v703 = vld [vmem:[%s465 + $0x178] sm:$0xff]
        %v704 = vld [vmem:[%s465 + $0x180] sm:$0xff]
        %v705 = vld [vmem:[%s465 + $0x188] sm:$0xff]
        %v706 = vld [vmem:[%s465 + $0x190] sm:$0xff]
        %v707 = vld [vmem:[%s465 + $0x198] sm:$0xff]
        %v708 = vld [vmem:[%s465 + $0x1a0] sm:$0xff]
        %v709 = vld [vmem:[%s465 + $0x1a8] sm:$0xff]
        %v710 = vld [vmem:[%s465 + $0x1b0] sm:$0xff]
        %v711 = vld [vmem:[%s465 + $0x1b8] sm:$0xff]
        %v712 = vld [vmem:[%s465 + $0x1c0] sm:$0xff]
        %v713 = vld [vmem:[%s465 + $0x1c8] sm:$0xff]
        %v714 = vld [vmem:[%s465 + $0x1d0] sm:$0xff]
        %v715 = vld [vmem:[%s465 + $0x1d8] sm:$0xff]
        %v716 = vld [vmem:[%s465 + $0x1e0] sm:$0xff]
        %v717 = vld [vmem:[%s465 + $0x1e8] sm:$0xff]
        %v718 = vld [vmem:[%s465 + $0x1f0] sm:$0xff]
        %v719 = vld [vmem:[%s465 + $0x1f8] sm:$0xff]
        %v720 = vld [vmem:[%s473] sm:$0x3]
        %v722 = vlaneseq
        %v723 = vshrl.u32 %v722, 7
        %v724 = vsub.s32 0, %v723
        %v725 = vrot.slane %v720, %v724
        %v726 = vlaneseq
        %v727 = vshrl.u32 %v726, 7
        %v728 = vsub.s32 1, %v727
        %v729 = vrot.slane %v720, %v728
        %732 = vmatprep.subr.mxu0 %v657
        %733 = vmatpush1.msra.mxu0 %v656
        %734 = vmatprep.subr.mxu0 %v659
        %735 = vmatpush1.msra.mxu0 %v658
        %736 = vmatprep.subr.mxu0 %v661
        %737 = vmatpush1.msra.mxu0 %v660
        %738 = vmatprep.subr.mxu0 %v663
        %739 = vmatpush1.msra.mxu0 %v662
        %740 = vmatprep.subr.mxu0 %v665
        %741 = vmatpush1.msra.mxu0 %v664
        %742 = vmatprep.subr.mxu0 %v667
        %743 = vmatpush1.msra.mxu0 %v666
        %744 = vmatprep.subr.mxu0 %v669
        %745 = vmatpush1.msra.mxu0 %v668
        %746 = vmatprep.subr.mxu0 %v671
        %747 = vmatpush1.msra.mxu0 %v670
        %748 = vmatprep.subr.mxu0 %v673
        %749 = vmatpush1.msra.mxu0 %v672
        %750 = vmatprep.subr.mxu0 %v675
        %751 = vmatpush1.msra.mxu0 %v674
        %752 = vmatprep.subr.mxu0 %v677
        %753 = vmatpush1.msra.mxu0 %v676
        %754 = vmatprep.subr.mxu0 %v679
        %755 = vmatpush1.msra.mxu0 %v678
        %756 = vmatprep.subr.mxu0 %v681
        %757 = vmatpush1.msra.mxu0 %v680
        %758 = vmatprep.subr.mxu0 %v683
        %759 = vmatpush1.msra.mxu0 %v682
        %760 = vmatprep.subr.mxu0 %v685
        %761 = vmatpush1.msra.mxu0 %v684
        %762 = vmatprep.subr.mxu0 %v687
        %763 = vmatpush1.msra.mxu0 %v686
        %764 = vmatprep.subr.mxu0 %v689
        %765 = vmatpush1.msra.mxu0 %v688
        %766 = vmatprep.subr.mxu0 %v691
        %767 = vmatpush1.msra.mxu0 %v690
        %768 = vmatprep.subr.mxu0 %v693
        %769 = vmatpush1.msra.mxu0 %v692
        %770 = vmatprep.subr.mxu0 %v695
        %771 = vmatpush1.msra.mxu0 %v694
        %772 = vmatprep.subr.mxu0 %v697
        %773 = vmatpush1.msra.mxu0 %v696
        %774 = vmatprep.subr.mxu0 %v699
        %775 = vmatpush1.msra.mxu0 %v698
        %776 = vmatprep.subr.mxu0 %v701
        %777 = vmatpush1.msra.mxu0 %v700
        %778 = vmatprep.subr.mxu0 %v703
        %779 = vmatpush1.msra.mxu0 %v702
        %780 = vmatprep.subr.mxu0 %v705
        %781 = vmatpush1.msra.mxu0 %v704
        %782 = vmatprep.subr.mxu0 %v707
        %783 = vmatpush1.msra.mxu0 %v706
        %784 = vmatprep.subr.mxu0 %v709
        %785 = vmatpush1.msra.mxu0 %v708
        %786 = vmatprep.subr.mxu0 %v711
        %787 = vmatpush1.msra.mxu0 %v710
        %788 = vmatprep.subr.mxu0 %v713
        %789 = vmatpush1.msra.mxu0 %v712
        %790 = vmatprep.subr.mxu0 %v715
        %791 = vmatpush1.msra.mxu0 %v714
        %792 = vmatprep.subr.mxu0 %v717
        %793 = vmatpush1.msra.mxu0 %v716
        %794 = vmatprep.subr.mxu0 %v719
        %795 = vmatpush1.msra.mxu0 %v718
        %796 = vmatprep.mubr.f32.mxu0 %v655
        %797 = vmatmul.mubr.f32.gmra.mrb[0].mxu0 %v654
        %v798 = vpop.f32.mrb[0].mxu0
        %v799 = vadd.f32 %v725, %v798
        %v800 = vpop.f32.mrb[0].mxu0
        %v801 = vadd.f32 %v729, %v800
        %802 = vdwg.mxu0
        %vm803 = vcmp.gt.f32.partialorder %v799, 0.0
        %vm804 = vcmp.gt.f32.partialorder %v801, 0.0
        %v805 = vmul.f32 %v799, 0.01
        %v806 = vmul.f32 %v801, 0.01
        %v807 = vsel %vm803, %v799, %v805
        %v808 = vsel %vm804, %v801, %v806
        %s809 = scalar_lea.vmem %s465, 512 [#allocation2]
        %v810 = vld [vmem:[%s809] sm:$0xff]
        %v811 = vld [vmem:[%s809 + $0x8] sm:$0xff]
        %v812 = vld [vmem:[%s809 + $0x10] sm:$0xff]
        %v813 = vld [vmem:[%s809 + $0x18] sm:$0xff]
        %v814 = vld [vmem:[%s809 + $0x20] sm:$0xff]
        %v815 = vld [vmem:[%s809 + $0x28] sm:$0xff]
        %v816 = vld [vmem:[%s809 + $0x30] sm:$0xff]
        %v817 = vld [vmem:[%s809 + $0x38] sm:$0xff]
        %v818 = vld [vmem:[%s809 + $0x40] sm:$0xff]
        %v819 = vld [vmem:[%s809 + $0x48] sm:$0xff]
        %v820 = vld [vmem:[%s809 + $0x50] sm:$0xff]
        %v821 = vld [vmem:[%s809 + $0x58] sm:$0xff]
        %v822 = vld [vmem:[%s809 + $0x60] sm:$0xff]
        %v823 = vld [vmem:[%s809 + $0x68] sm:$0xff]
        %v824 = vld [vmem:[%s809 + $0x70] sm:$0xff]
        %v825 = vld [vmem:[%s809 + $0x78] sm:$0xff]
        %v826 = vld [vmem:[%s809 + $0x80] sm:$0xff]
        %v827 = vld [vmem:[%s809 + $0x88] sm:$0xff]
        %v828 = vld [vmem:[%s809 + $0x90] sm:$0xff]
        %v829 = vld [vmem:[%s809 + $0x98] sm:$0xff]
        %v830 = vld [vmem:[%s809 + $0xa0] sm:$0xff]
        %v831 = vld [vmem:[%s809 + $0xa8] sm:$0xff]
        %v832 = vld [vmem:[%s809 + $0xb0] sm:$0xff]
        %v833 = vld [vmem:[%s809 + $0xb8] sm:$0xff]
        %v834 = vld [vmem:[%s809 + $0xc0] sm:$0xff]
        %v835 = vld [vmem:[%s809 + $0xc8] sm:$0xff]
        %v836 = vld [vmem:[%s809 + $0xd0] sm:$0xff]
        %v837 = vld [vmem:[%s809 + $0xd8] sm:$0xff]
        %v838 = vld [vmem:[%s809 + $0xe0] sm:$0xff]
        %v839 = vld [vmem:[%s809 + $0xe8] sm:$0xff]
        %v840 = vld [vmem:[%s809 + $0xf0] sm:$0xff]
        %v841 = vld [vmem:[%s809 + $0xf8] sm:$0xff]
        %v842 = vld [vmem:[%s809 + $0x100] sm:$0xff]
        %v843 = vld [vmem:[%s809 + $0x108] sm:$0xff]
        %v844 = vld [vmem:[%s809 + $0x110] sm:$0xff]
        %v845 = vld [vmem:[%s809 + $0x118] sm:$0xff]
        %v846 = vld [vmem:[%s809 + $0x120] sm:$0xff]
        %v847 = vld [vmem:[%s809 + $0x128] sm:$0xff]
        %v848 = vld [vmem:[%s809 + $0x130] sm:$0xff]
        %v849 = vld [vmem:[%s809 + $0x138] sm:$0xff]
        %v850 = vld [vmem:[%s809 + $0x140] sm:$0xff]
        %v851 = vld [vmem:[%s809 + $0x148] sm:$0xff]
        %v852 = vld [vmem:[%s809 + $0x150] sm:$0xff]
        %v853 = vld [vmem:[%s809 + $0x158] sm:$0xff]
        %v854 = vld [vmem:[%s809 + $0x160] sm:$0xff]
        %v855 = vld [vmem:[%s809 + $0x168] sm:$0xff]
        %v856 = vld [vmem:[%s809 + $0x170] sm:$0xff]
        %v857 = vld [vmem:[%s809 + $0x178] sm:$0xff]
        %v858 = vld [vmem:[%s809 + $0x180] sm:$0xff]
        %v859 = vld [vmem:[%s809 + $0x188] sm:$0xff]
        %v860 = vld [vmem:[%s809 + $0x190] sm:$0xff]
        %v861 = vld [vmem:[%s809 + $0x198] sm:$0xff]
        %v862 = vld [vmem:[%s809 + $0x1a0] sm:$0xff]
        %v863 = vld [vmem:[%s809 + $0x1a8] sm:$0xff]
        %v864 = vld [vmem:[%s809 + $0x1b0] sm:$0xff]
        %v865 = vld [vmem:[%s809 + $0x1b8] sm:$0xff]
        %v866 = vld [vmem:[%s809 + $0x1c0] sm:$0xff]
        %v867 = vld [vmem:[%s809 + $0x1c8] sm:$0xff]
        %v868 = vld [vmem:[%s809 + $0x1d0] sm:$0xff]
        %v869 = vld [vmem:[%s809 + $0x1d8] sm:$0xff]
        %v870 = vld [vmem:[%s809 + $0x1e0] sm:$0xff]
        %v871 = vld [vmem:[%s809 + $0x1e8] sm:$0xff]
        %v872 = vld [vmem:[%s809 + $0x1f0] sm:$0xff]
        %v873 = vld [vmem:[%s809 + $0x1f8] sm:$0xff]
        %s874 = scalar_lea.vmem %s473, 2 [#allocation5]
        %v875 = vld [vmem:[%s874] sm:$0x3]
        %v877 = vlaneseq
        %v878 = vshrl.u32 %v877, 7
        %v879 = vsub.s32 0, %v878
        %v880 = vrot.slane %v875, %v879
        %v881 = vlaneseq
        %v882 = vshrl.u32 %v881, 7
        %v883 = vsub.s32 1, %v882
        %v884 = vrot.slane %v875, %v883
        %887 = vmatprep.subr.mxu0 %v811
        %888 = vmatpush1.msra.mxu0 %v810
        %889 = vmatprep.subr.mxu0 %v813
        %890 = vmatpush1.msra.mxu0 %v812
        %891 = vmatprep.subr.mxu0 %v815
        %892 = vmatpush1.msra.mxu0 %v814
        %893 = vmatprep.subr.mxu0 %v817
        %894 = vmatpush1.msra.mxu0 %v816
        %895 = vmatprep.subr.mxu0 %v819
        %896 = vmatpush1.msra.mxu0 %v818
        %897 = vmatprep.subr.mxu0 %v821
        %898 = vmatpush1.msra.mxu0 %v820
        %899 = vmatprep.subr.mxu0 %v823
        %900 = vmatpush1.msra.mxu0 %v822
        %901 = vmatprep.subr.mxu0 %v825
        %902 = vmatpush1.msra.mxu0 %v824
        %903 = vmatprep.subr.mxu0 %v827
        %904 = vmatpush1.msra.mxu0 %v826
        %905 = vmatprep.subr.mxu0 %v829
        %906 = vmatpush1.msra.mxu0 %v828
        %907 = vmatprep.subr.mxu0 %v831
        %908 = vmatpush1.msra.mxu0 %v830
        %909 = vmatprep.subr.mxu0 %v833
        %910 = vmatpush1.msra.mxu0 %v832
        %911 = vmatprep.subr.mxu0 %v835
        %912 = vmatpush1.msra.mxu0 %v834
        %913 = vmatprep.subr.mxu0 %v837
        %914 = vmatpush1.msra.mxu0 %v836
        %915 = vmatprep.subr.mxu0 %v839
        %916 = vmatpush1.msra.mxu0 %v838
        %917 = vmatprep.subr.mxu0 %v841
        %918 = vmatpush1.msra.mxu0 %v840
        %919 = vmatprep.subr.mxu0 %v843
        %920 = vmatpush1.msra.mxu0 %v842
        %921 = vmatprep.subr.mxu0 %v845
        %922 = vmatpush1.msra.mxu0 %v844
        %923 = vmatprep.subr.mxu0 %v847
        %924 = vmatpush1.msra.mxu0 %v846
        %925 = vmatprep.subr.mxu0 %v849
        %926 = vmatpush1.msra.mxu0 %v848
        %927 = vmatprep.subr.mxu0 %v851
        %928 = vmatpush1.msra.mxu0 %v850
        %929 = vmatprep.subr.mxu0 %v853
        %930 = vmatpush1.msra.mxu0 %v852
        %931 = vmatprep.subr.mxu0 %v855
        %932 = vmatpush1.msra.mxu0 %v854
        %933 = vmatprep.subr.mxu0 %v857
        %934 = vmatpush1.msra.mxu0 %v856
        %935 = vmatprep.subr.mxu0 %v859
        %936 = vmatpush1.msra.mxu0 %v858
        %937 = vmatprep.subr.mxu0 %v861
        %938 = vmatpush1.msra.mxu0 %v860
        %939 = vmatprep.subr.mxu0 %v863
        %940 = vmatpush1.msra.mxu0 %v862
        %941 = vmatprep.subr.mxu0 %v865
        %942 = vmatpush1.msra.mxu0 %v864
        %943 = vmatprep.subr.mxu0 %v867
        %944 = vmatpush1.msra.mxu0 %v866
        %945 = vmatprep.subr.mxu0 %v869
        %946 = vmatpush1.msra.mxu0 %v868
        %947 = vmatprep.subr.mxu0 %v871
        %948 = vmatpush1.msra.mxu0 %v870
        %949 = vmatprep.subr.mxu0 %v873
        %950 = vmatpush1.msra.mxu0 %v872
        %951 = vmatprep.mubr.f32.mxu0 %v808
        %952 = vmatmul.mubr.f32.gmra.mrb[0].mxu0 %v807
        %v953 = vpop.f32.mrb[0].mxu0
        %v954 = vadd.f32 %v880, %v953
        %v955 = vpop.f32.mrb[0].mxu0
        %v956 = vadd.f32 %v884, %v955
        %957 = vdwg.mxu0
        %vm958 = vcmp.gt.f32.partialorder %v954, 0.0
        %vm959 = vcmp.gt.f32.partialorder %v956, 0.0
        %v960 = vmul.f32 %v954, 0.01
        %v961 = vmul.f32 %v956, 0.01
        %v962 = vsel %vm958, %v954, %v960
        %v963 = vsel %vm959, %v956, %v961
        %v964 = vld [vmem:[%s481] sm:$0xff]
        %v965 = vld [vmem:[%s481 + $0x8] sm:$0xff]
        %v966 = vld [vmem:[%s481 + $0x10] sm:$0xff]
        %v967 = vld [vmem:[%s481 + $0x18] sm:$0xff]
        %v968 = vld [vmem:[%s481 + $0x20] sm:$0xff]
        %v969 = vld [vmem:[%s481 + $0x28] sm:$0xff]
        %v970 = vld [vmem:[%s481 + $0x30] sm:$0xff]
        %v971 = vld [vmem:[%s481 + $0x38] sm:$0xff]
        %v972 = vld [vmem:[%s481 + $0x40] sm:$0xff]
        %v973 = vld [vmem:[%s481 + $0x48] sm:$0xff]
        %v974 = vld [vmem:[%s481 + $0x50] sm:$0xff]
        %v975 = vld [vmem:[%s481 + $0x58] sm:$0xff]
        %v976 = vld [vmem:[%s481 + $0x60] sm:$0xff]
        %v977 = vld [vmem:[%s481 + $0x68] sm:$0xff]
        %v978 = vld [vmem:[%s481 + $0x70] sm:$0xff]
        %v979 = vld [vmem:[%s481 + $0x78] sm:$0xff]
        %v980 = vld [vmem:[%s481 + $0x80] sm:$0xff]
        %v981 = vld [vmem:[%s481 + $0x88] sm:$0xff]
        %v982 = vld [vmem:[%s481 + $0x90] sm:$0xff]
        %v983 = vld [vmem:[%s481 + $0x98] sm:$0xff]
        %v984 = vld [vmem:[%s481 + $0xa0] sm:$0xff]
        %v985 = vld [vmem:[%s481 + $0xa8] sm:$0xff]
        %v986 = vld [vmem:[%s481 + $0xb0] sm:$0xff]
        %v987 = vld [vmem:[%s481 + $0xb8] sm:$0xff]
        %v988 = vld [vmem:[%s481 + $0xc0] sm:$0xff]
        %v989 = vld [vmem:[%s481 + $0xc8] sm:$0xff]
        %v990 = vld [vmem:[%s481 + $0xd0] sm:$0xff]
        %v991 = vld [vmem:[%s481 + $0xd8] sm:$0xff]
        %v992 = vld [vmem:[%s481 + $0xe0] sm:$0xff]
        %v993 = vld [vmem:[%s481 + $0xe8] sm:$0xff]
        %v994 = vld [vmem:[%s481 + $0xf0] sm:$0xff]
        %v995 = vld [vmem:[%s481 + $0xf8] sm:$0xff]
        %v996 = vld [vmem:[%s550] sm:$0x1]
        %v998 = vlaneseq
        %v999 = vshrl.u32 %v998, 7
        %v1000 = vsub.s32 0, %v999
        %v1001 = vrot.slane %v996, %v1000
        %1003 = vmatprep.subr.mxu0 0.0
        %1004 = vmatpush1.msra.mxu0 %v964
        %1005 = vmatprep.subr.mxu0 0.0
        %1006 = vmatpush1.msra.mxu0 %v965
        %1007 = vmatprep.subr.mxu0 0.0
        %1008 = vmatpush1.msra.mxu0 %v966
        %1009 = vmatprep.subr.mxu0 0.0
        %1010 = vmatpush1.msra.mxu0 %v967
        %1011 = vmatprep.subr.mxu0 0.0
        %1012 = vmatpush1.msra.mxu0 %v968
        %1013 = vmatprep.subr.mxu0 0.0
        %1014 = vmatpush1.msra.mxu0 %v969
        %1015 = vmatprep.subr.mxu0 0.0
        %1016 = vmatpush1.msra.mxu0 %v970
        %1017 = vmatprep.subr.mxu0 0.0
        %1018 = vmatpush1.msra.mxu0 %v971
        %1019 = vmatprep.subr.mxu0 0.0
        %1020 = vmatpush1.msra.mxu0 %v972
        %1021 = vmatprep.subr.mxu0 0.0
        %1022 = vmatpush1.msra.mxu0 %v973
        %1023 = vmatprep.subr.mxu0 0.0
        %1024 = vmatpush1.msra.mxu0 %v974
        %1025 = vmatprep.subr.mxu0 0.0
        %1026 = vmatpush1.msra.mxu0 %v975
        %1027 = vmatprep.subr.mxu0 0.0
        %1028 = vmatpush1.msra.mxu0 %v976
        %1029 = vmatprep.subr.mxu0 0.0
        %1030 = vmatpush1.msra.mxu0 %v977
        %1031 = vmatprep.subr.mxu0 0.0
        %1032 = vmatpush1.msra.mxu0 %v978
        %1033 = vmatprep.subr.mxu0 0.0
        %1034 = vmatpush1.msra.mxu0 %v979
        %1035 = vmatprep.subr.mxu0 0.0
        %1036 = vmatpush1.msra.mxu0 %v980
        %1037 = vmatprep.subr.mxu0 0.0
        %1038 = vmatpush1.msra.mxu0 %v981
        %1039 = vmatprep.subr.mxu0 0.0
        %1040 = vmatpush1.msra.mxu0 %v982
        %1041 = vmatprep.subr.mxu0 0.0
        %1042 = vmatpush1.msra.mxu0 %v983
        %1043 = vmatprep.subr.mxu0 0.0
        %1044 = vmatpush1.msra.mxu0 %v984
        %1045 = vmatprep.subr.mxu0 0.0
        %1046 = vmatpush1.msra.mxu0 %v985
        %1047 = vmatprep.subr.mxu0 0.0
        %1048 = vmatpush1.msra.mxu0 %v986
        %1049 = vmatprep.subr.mxu0 0.0
        %1050 = vmatpush1.msra.mxu0 %v987
        %1051 = vmatprep.subr.mxu0 0.0
        %1052 = vmatpush1.msra.mxu0 %v988
        %1053 = vmatprep.subr.mxu0 0.0
        %1054 = vmatpush1.msra.mxu0 %v989
        %1055 = vmatprep.subr.mxu0 0.0
        %1056 = vmatpush1.msra.mxu0 %v990
        %1057 = vmatprep.subr.mxu0 0.0
        %1058 = vmatpush1.msra.mxu0 %v991
        %1059 = vmatprep.subr.mxu0 0.0
        %1060 = vmatpush1.msra.mxu0 %v992
        %1061 = vmatprep.subr.mxu0 0.0
        %1062 = vmatpush1.msra.mxu0 %v993
        %1063 = vmatprep.subr.mxu0 0.0
        %1064 = vmatpush1.msra.mxu0 %v994
        %1065 = vmatprep.subr.mxu0 0.0
        %1066 = vmatpush1.msra.mxu0 %v995
        %1067 = vmatprep.mubr.f32.mxu0 %v963
        %1068 = vmatmul.mubr.f32.gmra.mrb[0].mxu0 %v962
        %v1069 = vpop.f32.mrb[0].mxu0
        %v1070 = vadd.f32 %v1001, %v1069
        %v1071 = vpop.f32.mrb[0].mxu0
        %1072 = vdwg.mxu0
        %v1073 = vld [vmem:[%s1] sm:$0x1]
        %v1075 = vlaneseq
        %v1076 = vshrl.u32 %v1075, 7
        %v1077 = vsub.s32 0, %v1076
        %v1078 = vrot.slane %v1073, %v1077
        %v1080 = vmul.f32 %v1070, %v1078
        %v1081 = vld [vmem:[%s2] sm:$0x3]
        %v1082 = vadd.f32 %v1080, %v1081
        %v1083 = vld [vmem:[%s3] sm:$0x1]
        %vm1084 = vcmp.gt.f32.partialorder %v1083, 0.0
        %v1085 = vxor.u32 %v1082, 2147483648
        %v1086 = vmul.f32 %v1085, 1.442695
        %v1087 = vpow.pop %v1086
        %v1088 = vadd.f32 %v1087, 1.0
        %v1089 = vrcp.pop %v1088
        %v1090 = vmul.f32 1.0, %v1089
        %v1091 = vsel %vm1084, 1, 0
        %v1092 = vlaneseq
        %v1093 = vshrl.u32 %v1092, 7
        %v1094 = vsub.s32 0, %v1093
        %v1095 = vrot.slane %v1091, %v1094
        %vm1096 = vcmp.eq.s32.totalorder %v1095, 1
        %v1097 = vsel %vm1096, %v1090, %v1082
        %1098 = vst [vmem:[%s538] sm:$0x3] %v1097
        %s1099 = sand.u32 %s278, 1
        %s1100 = scalar_lea.sflag [#allocation4], %s1099
        %s1101 = sand.u32 %s278, 1
        %s1102 = smul.addr %s1101, 2
        %s1103 = scalar_lea.vmem [#allocation8], %s1102
        // Predicated region
        $region103: #{tpu_custom_call.1} parent=89 // pred_check
          %p1104 = pneg %p288
        $region104: #{tpu_custom_call.1} parent=89 // pred_check_branch
          %1106 = sbr.rel (%p1104) target = $region106
        $region105: #{tpu_custom_call.1} parent=89 // pred_region
          %s1108 = ssub.s32 32, 32
          %1109 = vsyncadd %s1100, %s1108
          %s1110 = smul.addr %s30, 32
          %s1111 = scalar_lea.hbm %s10, %s1110
          %s1113 = sshll.u32 %s1103, 4
          %s1114 = int_to_ptr.vmem [resolvable:$true] %s1113
          %1116 = dma.vmem_to_hbm [thread:$0]  %s1114, 32, %s1111, %s1100
        $region106: #{tpu_custom_call.1} parent=89 // pred_fallthru
          _
      $region90: #{tpu_custom_call.1} parent=5 // pred_fallthru
        _
      %p1117 = scmp.le.s32.totalorder 2, %s25
      // Predicated region
      $region107: #{tpu_custom_call.1} parent=5 // pred_check
        %p1118 = pneg %p1117
      $region108: #{tpu_custom_call.1} parent=5 // pred_check_branch
        %1120 = sbr.rel (%p1118) target = $region110
      $region109: #{tpu_custom_call.1} parent=5 // pred_region
        %s1121 = ssub.s32 %s25, 2
        // Predicated region
        $region111: #{tpu_custom_call.1} parent=109 // pred_check
          %p1122 = pneg %p294
        $region112: #{tpu_custom_call.1} parent=109 // pred_check_branch
          %1124 = sbr.rel (%p1122) target = $region114
        $region113: #{tpu_custom_call.1} parent=109 // pred_region
          %s1125 = sand.u32 %s279, 1
          %s1126 = scalar_lea.sflag [#allocation4], %s1125
          %s1127 = sand.u32 %s279, 1
          %s1128 = smul.addr %s1127, 2
          %s1129 = scalar_lea.vmem [#allocation8], %s1128
          %1130 = dma.done %s1126, 32
        $region114: #{tpu_custom_call.1} parent=109 // pred_fallthru
          _
      $region110: #{tpu_custom_call.1} parent=5 // pred_fallthru
        _
    $region6: #{tpu_custom_call.1} parent=1 // loop_footer
      %s29 = sadd.s32 1, %s25
    $region7: #{tpu_custom_call.1} parent=1 // loop_footer_branch
      %24 = sbr.rel target = $region3
    $region8: #{tpu_custom_call.1} parent=1 // loop_exit
      _
    %1131 = vsyncpa [#allocation3], 1
    %s1132 = scalar_lea.sflag [#allocation3], 1
    %1133 = vsyncpa %s1132, 1
    %1134 = vsyncpa [#allocation7], 1
    %s1135 = scalar_lea.sflag [#allocation7], 1
    %1136 = vsyncpa %s1135, 1
    %1137 = vsyncpa [#allocation4], 1
    %s1138 = scalar_lea.sflag [#allocation4], 1
    %1139 = vsyncpa %s1138, 1

</llo_original>
